<compile_context>
chip_gen: v7x
topology: tpu7x:2x2x1
jax: 0.10.0
libtpu: 0.0.40
codegen_flags: <defaults>
</compile_context>

<pallas_src>
import numpy as np
import jax
import jax.numpy as jnp
from jax.experimental import pallas as pl
from jax.experimental.pallas import tpu as pltpu


# ----------------------------- configuration -------------------------------
B = 2              # batch
C_IN = 16          # encoder feature channels (stand-in for 768)
H = W = 7          # img_params
HW = H * W
F_SPHERE = 32      # sphere_fdim (stand-in for 512)
LMAX_MODEL = 4     # module lmax (stand-in for 20); L = lmax - 1 everywhere
L = LMAX_MODEL - 1
DIN = (L + 1) ** 2                                  # s2 irreps dim  (sum 2l+1)
DOUT = sum((2 * l + 1) ** 2 for l in range(L + 1))  # so3 irreps dim = 84
DOUT_PAD = 128     # lane-dense padded output width
FDIN = F_SPHERE * DIN
N_PTS = 24         # projector kernel-grid points
N_SUBSET = 8       # projector n_subset (stand-in for 20)
N_S2 = 48          # s2_healpix_grid(rec_level=1) -> 48 points
N_SO3 = 72         # so3_healpix_grid points (stand-in for 36864)
G_ACT = 64         # SO3Activation grid size (stand-in for resolution=20 grid)
F_S2_OUT = 16      # s2_conv f_out
F_SO3_OUT = 1      # so3_conv f_out
CHW = C_IN * HW                 # 784
FNS = F_SPHERE * N_SUBSET       # 256
GGA = F_S2_OUT * G_ACT          # 1024


# ------------------- equivariant linear weight assembly ---------------------
# (prep-time only; never in the forward hot path)
def build_s2_linear_weight(psi, lmax):
    """psi: (f_in, f_out, (L+1)^2) -> dense (f_in*DIN, f_out*DOUT) block matrix
    implementing o3.Linear(s2_irreps, so3_irreps)."""
    f_in, f_out, _ = psi.shape
    dout = sum((2 * l + 1) ** 2 for l in range(lmax + 1))
    Wfull = jnp.zeros((f_in, (lmax + 1) ** 2, f_out, dout), jnp.float32)
    off_out = 0
    for l in range(lmax + 1):
        d = 2 * l + 1
        blk = psi[:, :, l * l:l * l + d]                      # (f_in, f_out, m)
        w_l = jnp.einsum('fgm,ce->fcgme', blk,
                         jnp.eye(d, dtype=psi.dtype)) / np.sqrt(f_in)
        Wfull = Wfull.at[:, l * l:l * l + d, :,
                         off_out:off_out + d * d].set(
            w_l.reshape(f_in, d, f_out, d * d))
        off_out += d * d
    return Wfull.reshape(f_in * (lmax + 1) ** 2, f_out * dout)


def build_so3_linear_weight(psi, lmax):
    """psi: (f_in, f_out, DOUT) -> dense (f_in*DOUT, f_out*DOUT) block matrix
    implementing o3.Linear(so3_irreps, so3_irreps)."""
    f_in, f_out, dout = psi.shape
    Wfull = jnp.zeros((f_in, dout, f_out, dout), jnp.float32)
    off = 0
    for l in range(lmax + 1):
        d = 2 * l + 1
        blk = psi[:, :, off:off + d * d].reshape(f_in, f_out, d, d)
        w_l = jnp.einsum('fgnm,ce->fncgme', blk,
                         jnp.eye(d, dtype=psi.dtype)) / np.sqrt(f_in * d)
        Wfull = Wfull.at[:, off:off + d * d, :, off:off + d * d].set(
            w_l.reshape(f_in, d * d, f_out, d * d))
        off += d * d
    return Wfull.reshape(f_in * dout, f_out * dout)


# ------------------------------ Pallas kernel --------------------------------
def _i2s_kernel(x_ref, wbig_ref, bias_ref, w1_ref, w2_ref, o_ref):
    """Fused I2S forward for the whole batch (grid=()); all operands in VMEM.

    x:(B,C*HW) f32   wbig:(C*HW,F*nsub) f32   bias:(1,F*nsub) f32
    w1:(F*nsub,G*G_ACT) bf16   w2:(G*G_ACT,128) bf16   o:(B,128) f32
    """
    # conv1x1 (+bias) folded with the gaussian spatial projection, then relu.
    p = jnp.maximum(
        jnp.dot(x_ref[...], wbig_ref[...],
                preferred_element_type=jnp.float32) + bias_ref[...], 0.0)
    # SH expansion + S2Conv equivariant linear + SO3Act to_grid (all folded).
    gs = jnp.maximum(
        jnp.dot(p, w1_ref[...].astype(jnp.float32),
                preferred_element_type=jnp.float32), 0.0)
    # SO3Act from_grid + SO3Conv equivariant linear (folded, 128-lane padded).
    o_ref[...] = jnp.dot(gs, w2_ref[...].astype(jnp.float32),
                         preferred_element_type=jnp.float32)


def i2s_call(x_flat, kp):
    b = x_flat.shape[0]
    flops = 2 * b * (CHW * FNS + FNS * GGA + GGA * DOUT_PAD)
    bytes_accessed = (x_flat.size * 4 + kp['w_big'].size * 4
                      + kp['bias'].size * 4 + kp['w1'].size * 2
                      + kp['w2'].size * 2 + b * DOUT_PAD * 4)
    return pl.pallas_call(
        _i2s_kernel,
        out_shape=jax.ShapeDtypeStruct((b, DOUT_PAD), jnp.float32),
        cost_estimate=pl.CostEstimate(flops=flops, transcendentals=0,
                                      bytes_accessed=bytes_accessed),
    )(x_flat, kp['w_big'], kp['bias'], kp['w1'], kp['w2'])


# ------------------------------ I2S forward ---------------------------------
def i2s_forward(x, kp):
    """x: (B, C_in, H, W) encoder feature map. Returns (B, 1, DOUT)."""
    b = x.shape[0]
    x_flat = x.reshape(b, CHW)                       # contiguous, free
    out_pad = i2s_call(x_flat, kp)                   # (B, 128) lane-dense
    return out_pad[:, :DOUT].reshape(b, F_SO3_OUT, DOUT)


def i2s_forward_ref(x, rp):
    """Pure-JAX reference of the UN-folded original op chain (f32, HIGHEST).
    Validates the prep-time folds and the bf16 weight cast end-to-end."""
    hp = jax.lax.Precision.HIGHEST
    b = x.shape[0]
    x3 = x.reshape(b, C_IN, HW)
    t = jnp.einsum('fc,bch->bfh', rp['conv_wt'], x3, precision=hp) \
        + rp['conv_b'][None, :, None]
    p = jnp.maximum(jnp.einsum('bfh,hn->bfn', t, rp['wproj'], precision=hp), 0.0)
    y = jnp.einsum('bfn,nd->bfd', p, rp['ysub'], precision=hp)       # (B,F,DIN)
    z1 = jnp.einsum('bk,ko->bo', y.reshape(b, FDIN), rp['w_lin'],
                    precision=hp).reshape(b, F_S2_OUT, DOUT)
    gs = jnp.maximum(jnp.einsum('bgo,oa->bga', z1, rp['to_grid'],
                                precision=hp), 0.0)
    z2 = jnp.einsum('bga,ao->bgo', gs, rp['from_grid'], precision=hp)
    out = jnp.einsum('bk,kq->bq', z2.reshape(b, F_S2_OUT * DOUT),
                     rp['w_lin2'], precision=hp)
    return out.reshape(b, F_SO3_OUT, DOUT)


# ------------------------------ parameters ----------------------------------
def make_params(key):
    ks = jax.random.split(key, 10)
    return {
        'conv_w': jax.random.normal(ks[0], (C_IN, F_SPHERE), jnp.float32)
                  / np.sqrt(C_IN),
        'conv_b': jax.random.normal(ks[1], (F_SPHERE,), jnp.float32) * 0.1,
        'proj_weight': jax.nn.softmax(
            jax.random.normal(ks[2], (1, 1, H, W, N_PTS), jnp.float32),
            axis=(2, 3)),
        'Y_proj': jax.random.normal(ks[3], (N_PTS, DIN), jnp.float32),
        'ind': jax.random.permutation(ks[4], N_PTS)[:N_SUBSET],
        's2_w': jax.random.normal(ks[5], (F_SPHERE, F_S2_OUT, N_S2), jnp.float32),
        'Y_s2': jax.random.normal(ks[6], (N_S2, DIN), jnp.float32),
        'act_to_grid': jax.random.normal(ks[7], (DOUT, G_ACT), jnp.float32)
                       / np.sqrt(DOUT),
        'act_from_grid': jax.random.normal(ks[8], (G_ACT, DOUT), jnp.float32)
                         / np.sqrt(G_ACT),
        'so3_w': jax.random.normal(ks[9], (F_S2_OUT, F_SO3_OUT, N_SO3), jnp.float32),
        'D_so3': jax.random.normal(jax.random.fold_in(key, 99),
                                   (N_SO3, DOUT), jnp.float32),
    }


def prepare_kernel_params(params):
    """One-time assembly of kernel-ready weights. All transposes, gathers,
    scale folding, block-diagonal equivariant-linear construction AND the
    linear-map folds (conv⊗proj, ysub·w_lin·to_grid, from_grid·w_lin2) happen
    here — never in the per-forward hot path."""
    ind = params['ind']
    nsub = int(ind.shape[0])

    conv_wt = params['conv_w'].T.astype(jnp.float32)                  # (F, C)
    conv_b = params['conv_b'].astype(jnp.float32)                     # (F,)
    wproj = params['proj_weight'][0, 0].reshape(HW, N_PTS)[:, ind]    # (HW, nsub)
    ysub = params['Y_proj'][ind] / np.sqrt(nsub)                      # (nsub, DIN)

    # S2Conv psi -> dense equivariant linear (FDIN, G*DOUT)
    f_in, g, n_s2 = params['s2_w'].shape
    psi = (params['s2_w'].reshape(f_in * g, n_s2) @ params['Y_s2']) / np.sqrt(n_s2)
    w_lin = build_s2_linear_weight(psi.reshape(f_in, g, DIN), L)

    # SO3Conv psi -> dense equivariant linear (G*DOUT, DOUT)
    g_in, g_out, n_so3 = params['so3_w'].shape
    psi2 = (params['so3_w'].reshape(g_in * g_out, n_so3) @ params['D_so3']) \
           / np.sqrt(n_so3)
    w_lin2 = build_so3_linear_weight(psi2.reshape(g_in, g_out, DOUT), L)

    to_grid = params['act_to_grid']
    from_grid = params['act_from_grid']

    # ---- prep-time folds --------------------------------------------------
    # (1) conv1x1 ⊗ gaussian projection (Kronecker), bias folded through proj.
    w_big = jnp.einsum('fc,hn->chfn', conv_wt, wproj).reshape(CHW, FNS)
    bias = (conv_b[:, None] * wproj.sum(axis=0)[None, :]).reshape(1, FNS)
    # (2) ysub (blockdiag over F) . w_lin . to_grid (blockdiag over G).
    w1a = jnp.einsum('kgo,oa->kga', w_lin.reshape(FDIN, F_S2_OUT, DOUT),
                     to_grid).reshape(F_SPHERE, DIN, GGA)
    w1 = jnp.einsum('nd,fdk->fnk', ysub, w1a).reshape(FNS, GGA)
    # (3) from_grid (blockdiag over G) . w_lin2, lane-padded 84 -> 128.
    w2 = jnp.einsum('ao,goq->gaq', from_grid,
                    w_lin2.reshape(F_S2_OUT, DOUT, DOUT)).reshape(GGA, DOUT)
    w2 = jnp.zeros((GGA, DOUT_PAD), jnp.float32).at[:, :DOUT].set(w2)

    kp = {
        'w_big': w_big.astype(jnp.float32),   # (784, 256) f32
        'bias': bias.astype(jnp.float32),     # (1, 256)   f32
        'w1': w1.astype(jnp.bfloat16),        # (256, 1024) bf16; f32 acc in-kernel
        'w2': w2.astype(jnp.bfloat16),        # (1024, 128) bf16; f32 acc in-kernel
    }
    rp = {  # unfolded f32 weights for the pure-JAX reference
        'conv_wt': conv_wt, 'conv_b': conv_b, 'wproj': wproj, 'ysub': ysub,
        'w_lin': w_lin, 'to_grid': to_grid, 'from_grid': from_grid,
        'w_lin2': w_lin2,
    }
    return kp, rp


# --------------------------------- main --------------------------------------
if __name__ == "__main__":
    key = jax.random.PRNGKey(0)
    pkey, xkey = jax.random.split(key)
    params = make_params(pkey)
    kp, rp = prepare_kernel_params(params)
    kp = jax.tree_util.tree_map(jax.block_until_ready, kp)
    # input: encoder feature map (stand-in for SWIN output), NCHW
    x = jax.random.normal(xkey, (B, C_IN, H, W), jnp.float32)

    fwd = jax.jit(i2s_forward)
    out = jax.block_until_ready(fwd(x, kp))
    assert out.shape == (B, F_SO3_OUT, DOUT), out.shape
    assert out.dtype == jnp.float32

    # Validate the fused/folded bf16-weight kernel against the un-folded f32
    # reference chain (bf16 weight storage => ~0.5% relative error budget).
    ref = jax.block_until_ready(i2s_forward_ref(x, rp))
    np.testing.assert_allclose(np.asarray(out), np.asarray(ref),
                               rtol=2e-2, atol=2e-2)

    print("KERNEL_OK")
</pallas_src>

<mosaic_0001>
module attributes {stable_mosaic.version = 11 : i64} {
  func.func @_i2s_kernel(%arg0: memref<2x784xf32, #tpu.memory_space<vmem>>, %arg1: memref<784x256xf32, #tpu.memory_space<vmem>>, %arg2: memref<1x256xf32, #tpu.memory_space<vmem>>, %arg3: memref<256x1024xbf16, #tpu.memory_space<vmem>>, %arg4: memref<1024x128xbf16, #tpu.memory_space<vmem>>, %arg5: memref<2x128xf32, #tpu.memory_space<vmem>>) attributes {dimension_semantics = [], scalar_prefetch = 0 : i64, scratch_operands = 0 : i64, tpu.core_type = #tpu.core_type<tc>} {
    %c0 = arith.constant 0 : index
    %c0_0 = arith.constant 0 : index
    %0 = vector.load %arg0[%c0, %c0_0] : memref<2x784xf32, #tpu.memory_space<vmem>>, vector<2x784xf32>
    %c0_1 = arith.constant 0 : index
    %c0_2 = arith.constant 0 : index
    %1 = vector.load %arg1[%c0_1, %c0_2] : memref<784x256xf32, #tpu.memory_space<vmem>>, vector<784x256xf32>
    %cst = arith.constant dense<0.000000e+00> : vector<2x256xf32>
    %2 = tpu.matmul %0, %1, %cst {dimension_numbers = #tpu.dot_dimension_numbers<[1], [0], [0], [1], [0, 0, 1, 1], [], []>} : vector<2x784xf32>, vector<784x256xf32>, vector<2x256xf32> -> vector<2x256xf32>
    %c0_3 = arith.constant 0 : index
    %c0_4 = arith.constant 0 : index
    %3 = vector.load %arg2[%c0_3, %c0_4] : memref<1x256xf32, #tpu.memory_space<vmem>>, vector<1x256xf32>
    %4 = vector.broadcast %3 : vector<1x256xf32> to vector<2x256xf32>
    %5 = arith.addf %2, %4 : vector<2x256xf32>
    %cst_5 = arith.constant 0.000000e+00 : f32
    %6 = vector.broadcast %cst_5 : f32 to vector<2x256xf32>
    %7 = arith.maximumf %5, %6 : vector<2x256xf32>
    %c0_6 = arith.constant 0 : index
    %c0_7 = arith.constant 0 : index
    %8 = vector.load %arg3[%c0_6, %c0_7] : memref<256x1024xbf16, #tpu.memory_space<vmem>>, vector<256x1024xbf16>
    %9 = arith.extf %8 : vector<256x1024xbf16> to vector<256x1024xf32>
    %cst_8 = arith.constant dense<0.000000e+00> : vector<2x1024xf32>
    %10 = tpu.matmul %7, %9, %cst_8 {dimension_numbers = #tpu.dot_dimension_numbers<[1], [0], [0], [1], [0, 0, 1, 1], [], []>} : vector<2x256xf32>, vector<256x1024xf32>, vector<2x1024xf32> -> vector<2x1024xf32>
    %cst_9 = arith.constant 0.000000e+00 : f32
    %11 = vector.broadcast %cst_9 : f32 to vector<2x1024xf32>
    %12 = arith.maximumf %10, %11 : vector<2x1024xf32>
    %c0_10 = arith.constant 0 : index
    %c0_11 = arith.constant 0 : index
    %13 = vector.load %arg4[%c0_10, %c0_11] : memref<1024x128xbf16, #tpu.memory_space<vmem>>, vector<1024x128xbf16>
    %14 = arith.extf %13 : vector<1024x128xbf16> to vector<1024x128xf32>
    %cst_12 = arith.constant dense<0.000000e+00> : vector<2x128xf32>
    %15 = tpu.matmul %12, %14, %cst_12 {dimension_numbers = #tpu.dot_dimension_numbers<[1], [0], [0], [1], [0, 0, 1, 1], [], []>} : vector<2x1024xf32>, vector<1024x128xf32>, vector<2x128xf32> -> vector<2x128xf32>
    %c0_13 = arith.constant 0 : index
    %c0_14 = arith.constant 0 : index
    %16 = vector.load %arg5[%c0_13, %c0_14] : memref<2x128xf32, #tpu.memory_space<vmem>>, vector<2x128xf32>
    tpu.vector_store %arg5[%c0_13, %c0_14], %15 {strides = array<i32>} : memref<2x128xf32, #tpu.memory_space<vmem>>, vector<2x128xf32>,
    return
  }
}

</mosaic_0001>

<llo_original>
// kernel: i2s_forward.1
$region0: #{i2s_forward.1}
  #allocation0 [shape = 'u32[]', space=smem, size = 0x4, offset = 0x4, fixed_abs, tag = 'smem constant byte address 0x4 - core index']
  #allocation1 [shape = 'u32[144,128]{1,0:T(1,128)}', space=vmem, size = 0x12000, scoped, tag = 'internal scratch']
  %s0 = inlined_call_operand.vmem [shape: f32[2,784], index: 0, kind: input, shape index: {}]
  %s1 = inlined_call_operand.hbm [shape: f32[784,256], index: 1, kind: input, shape index: {}]
  %s2 = inlined_call_operand.vmem [shape: f32[1,256], index: 2, kind: input, shape index: {}]
  %s3 = inlined_call_operand.hbm [shape: bf16[256,1024], index: 3, kind: input, shape index: {}]
  %s4 = inlined_call_operand.vmem [shape: bf16[1024,128], index: 4, kind: input, shape index: {}]
  %s5 = inlined_call_operand.hbm [shape: f32[2,128], index: 5, kind: output, shape index: {}]
  %s6 = sld [smem:[#allocation0]]
  $region38: #{i2s_forward.1} parent=0
    _
  %s8 = ssub.s32 1, %s6
  %s9 = scalar_select 0, %s8, %s6
  $region1: #{i2s_forward.1} parent=0
    #allocation2 [shape = 'u8[802816]{0}', space=vmem, size = 0xc4000, scoped, tag = 'input window, operand 1, single buffered']
    #allocation3 [shape = 's32[1]{0}', space=sflag, size = 0x4, scoped, tag = 'scoped memory for i2s_forward.1']
    #allocation4 [shape = 's32[1]{0}', space=sflag, size = 0x4, scoped, tag = 'scoped memory for i2s_forward.1']
    #allocation5 [shape = 'u8[524288]{0}', space=vmem, size = 0x80000, scoped, tag = 'input window, operand 3, single buffered']
    #allocation6 [shape = 's32[1]{0}', space=sflag, size = 0x4, scoped, tag = 'scoped memory for i2s_forward.1']
    #allocation7 [shape = 'u8[1024]{0}', space=vmem, size = 0x400, scoped, tag = 'output window, operand 0, single buffered']
    %10 = vsyncpa [#allocation3], 0
    %11 = vsyncpa [#allocation6], 0
    %12 = vsyncpa [#allocation4], 0
    // Predicated region
    $region2: #{i2s_forward.1} parent=1 // pred_check
      _
    $region3: #{i2s_forward.1} parent=1 // pred_check_branch
      %14 = sbr.rel (0) target = $region5
    $region4: #{i2s_forward.1} parent=1 // pred_region
      _
    $region5: #{i2s_forward.1} parent=1 // pred_fallthru
      _
    // Predicated region
    $region6: #{i2s_forward.1} parent=1 // pred_check
      _
    $region7: #{i2s_forward.1} parent=1 // pred_check_branch
      %16 = sbr.rel (0) target = $region9
    $region8: #{i2s_forward.1} parent=1 // pred_region
      %s18 = ssub.s32 25088, 25088
      %19 = vsyncadd [#allocation3], %s18
      %s20 = sshll.u32 [#allocation2], 4
      %s21 = int_to_ptr.vmem [resolvable:$true] %s20
      %26 = dma.hbm_to_vmem [thread:$0]  %s1, 25088, %s21, [#allocation3], 256, 256, 16
    $region9: #{i2s_forward.1} parent=1 // pred_fallthru
      _
    // Predicated region
    $region10: #{i2s_forward.1} parent=1 // pred_check
      _
    $region11: #{i2s_forward.1} parent=1 // pred_check_branch
      %28 = sbr.rel (0) target = $region13
    $region12: #{i2s_forward.1} parent=1 // pred_region
      _
    $region13: #{i2s_forward.1} parent=1 // pred_fallthru
      _
    // Predicated region
    $region14: #{i2s_forward.1} parent=1 // pred_check
      _
    $region15: #{i2s_forward.1} parent=1 // pred_check_branch
      %30 = sbr.rel (0) target = $region17
    $region16: #{i2s_forward.1} parent=1 // pred_region
      %s32 = ssub.s32 16384, 16384
      %33 = vsyncadd [#allocation6], %s32
      %s34 = sshll.u32 [#allocation5], 4
      %s35 = int_to_ptr.vmem [resolvable:$true] %s34
      %40 = dma.hbm_to_vmem [thread:$0]  %s3, 16384, %s35, [#allocation6], 512, 512, 32
    $region17: #{i2s_forward.1} parent=1 // pred_fallthru
      _
    // Predicated region
    $region18: #{i2s_forward.1} parent=1 // pred_check
      _
    $region19: #{i2s_forward.1} parent=1 // pred_check_branch
      %42 = sbr.rel (0) target = $region21
    $region20: #{i2s_forward.1} parent=1 // pred_region
      _
    $region21: #{i2s_forward.1} parent=1 // pred_fallthru
      _
    // Predicated region
    $region22: #{i2s_forward.1} parent=1 // pred_check
      _
    $region23: #{i2s_forward.1} parent=1 // pred_check_branch
      %44 = sbr.rel (0) target = $region25
    $region24: #{i2s_forward.1} parent=1 // pred_region
      %45 = dma.done [#allocation3], 25088
    $region25: #{i2s_forward.1} parent=1 // pred_fallthru
      _
    // Predicated region
    $region26: #{i2s_forward.1} parent=1 // pred_check
      _
    $region27: #{i2s_forward.1} parent=1 // pred_check_branch
      %47 = sbr.rel (0) target = $region29
    $region28: #{i2s_forward.1} parent=1 // pred_region
      %48 = dma.done [#allocation6], 16384
    $region29: #{i2s_forward.1} parent=1 // pred_fallthru
      _
    %v49 = vld [vmem:[%s0] sm:$0xff]
    %v50 = vld [vmem:[%s0 + $0x8] sm:$0x3f]
    %v51 = vld [vmem:[#allocation2] sm:$0xff]
    %v52 = vld [vmem:[#allocation2 + $0x8] sm:$0xff]
    %v53 = vld [vmem:[#allocation2 + $0x10] sm:$0xff]
    %v54 = vld [vmem:[#allocation2 + $0x18] sm:$0xff]
    %v55 = vld [vmem:[#allocation2 + $0x20] sm:$0xff]
    %v56 = vld [vmem:[#allocation2 + $0x28] sm:$0xff]
    %v57 = vld [vmem:[#allocation2 + $0x30] sm:$0xff]
    %v58 = vld [vmem:[#allocation2 + $0x38] sm:$0xff]
    %v59 = vld [vmem:[#allocation2 + $0x40] sm:$0xff]
    %v60 = vld [vmem:[#allocation2 + $0x48] sm:$0xff]
    %v61 = vld [vmem:[#allocation2 + $0x50] sm:$0xff]
    %v62 = vld [vmem:[#allocation2 + $0x58] sm:$0xff]
    %v63 = vld [vmem:[#allocation2 + $0x60] sm:$0xff]
    %v64 = vld [vmem:[#allocation2 + $0x68] sm:$0xff]
    %v65 = vld [vmem:[#allocation2 + $0x70] sm:$0xff]
    %v66 = vld [vmem:[#allocation2 + $0x78] sm:$0xff]
    %v67 = vld [vmem:[#allocation2 + $0x80] sm:$0xff]
    %v68 = vld [vmem:[#allocation2 + $0x88] sm:$0xff]
    %v69 = vld [vmem:[#allocation2 + $0x90] sm:$0xff]
    %v70 = vld [vmem:[#allocation2 + $0x98] sm:$0xff]
    %v71 = vld [vmem:[#allocation2 + $0xa0] sm:$0xff]
    %v72 = vld [vmem:[#allocation2 + $0xa8] sm:$0xff]
    %v73 = vld [vmem:[#allocation2 + $0xb0] sm:$0xff]
    %v74 = vld [vmem:[#allocation2 + $0xb8] sm:$0xff]
    %v75 = vld [vmem:[#allocation2 + $0xc0] sm:$0xff]
    %v76 = vld [vmem:[#allocation2 + $0xc8] sm:$0xff]
    %v77 = vld [vmem:[#allocation2 + $0xd0] sm:$0xff]
    %v78 = vld [vmem:[#allocation2 + $0xd8] sm:$0xff]
    %v79 = vld [vmem:[#allocation2 + $0xe0] sm:$0xff]
    %v80 = vld [vmem:[#allocation2 + $0xe8] sm:$0xff]
    %v81 = vld [vmem:[#allocation2 + $0xf0] sm:$0xff]
    %v82 = vld [vmem:[#allocation2 + $0xf8] sm:$0xff]
    %v83 = vld [vmem:[#allocation2 + $0x100] sm:$0xff]
    %v84 = vld [vmem:[#allocation2 + $0x108] sm:$0xff]
    %v85 = vld [vmem:[#allocation2 + $0x110] sm:$0xff]
    %v86 = vld [vmem:[#allocation2 + $0x118] sm:$0xff]
    %v87 = vld [vmem:[#allocation2 + $0x120] sm:$0xff]
    %v88 = vld [vmem:[#allocation2 + $0x128] sm:$0xff]
    %v89 = vld [vmem:[#allocation2 + $0x130] sm:$0xff]
    %v90 = vld [vmem:[#allocation2 + $0x138] sm:$0xff]
    %v91 = vld [vmem:[#allocation2 + $0x140] sm:$0xff]
    %v92 = vld [vmem:[#allocation2 + $0x148] sm:$0xff]
    %v93 = vld [vmem:[#allocation2 + $0x150] sm:$0xff]
    %v94 = vld [vmem:[#allocation2 + $0x158] sm:$0xff]
    %v95 = vld [vmem:[#allocation2 + $0x160] sm:$0xff]
    %v96 = vld [vmem:[#allocation2 + $0x168] sm:$0xff]
    %v97 = vld [vmem:[#allocation2 + $0x170] sm:$0xff]
    %v98 = vld [vmem:[#allocation2 + $0x178] sm:$0xff]
    %v99 = vld [vmem:[#allocation2 + $0x180] sm:$0xff]
    %v100 = vld [vmem:[#allocation2 + $0x188] sm:$0xff]
    %v101 = vld [vmem:[#allocation2 + $0x190] sm:$0xff]
    %v102 = vld [vmem:[#allocation2 + $0x198] sm:$0xff]
    %v103 = vld [vmem:[#allocation2 + $0x1a0] sm:$0xff]
    %v104 = vld [vmem:[#allocation2 + $0x1a8] sm:$0xff]
    %v105 = vld [vmem:[#allocation2 + $0x1b0] sm:$0xff]
    %v106 = vld [vmem:[#allocation2 + $0x1b8] sm:$0xff]
    %v107 = vld [vmem:[#allocation2 + $0x1c0] sm:$0xff]
    %v108 = vld [vmem:[#allocation2 + $0x1c8] sm:$0xff]
    %v109 = vld [vmem:[#allocation2 + $0x1d0] sm:$0xff]
    %v110 = vld [vmem:[#allocation2 + $0x1d8] sm:$0xff]
    %v111 = vld [vmem:[#allocation2 + $0x1e0] sm:$0xff]
    %v112 = vld [vmem:[#allocation2 + $0x1e8] sm:$0xff]
    %v113 = vld [vmem:[#allocation2 + $0x1f0] sm:$0xff]
    %v114 = vld [vmem:[#allocation2 + $0x1f8] sm:$0xff]
    %v115 = vld [vmem:[#allocation2 + $0x200] sm:$0xff]
    %v116 = vld [vmem:[#allocation2 + $0x208] sm:$0xff]
    %v117 = vld [vmem:[#allocation2 + $0x210] sm:$0xff]
    %v118 = vld [vmem:[#allocation2 + $0x218] sm:$0xff]
    %v119 = vld [vmem:[#allocation2 + $0x220] sm:$0xff]
    %v120 = vld [vmem:[#allocation2 + $0x228] sm:$0xff]
    %v121 = vld [vmem:[#allocation2 + $0x230] sm:$0xff]
    %v122 = vld [vmem:[#allocation2 + $0x238] sm:$0xff]
    %v123 = vld [vmem:[#allocation2 + $0x240] sm:$0xff]
    %v124 = vld [vmem:[#allocation2 + $0x248] sm:$0xff]
    %v125 = vld [vmem:[#allocation2 + $0x250] sm:$0xff]
    %v126 = vld [vmem:[#allocation2 + $0x258] sm:$0xff]
    %v127 = vld [vmem:[#allocation2 + $0x260] sm:$0xff]
    %v128 = vld [vmem:[#allocation2 + $0x268] sm:$0xff]
    %v129 = vld [vmem:[#allocation2 + $0x270] sm:$0xff]
    %v130 = vld [vmem:[#allocation2 + $0x278] sm:$0xff]
    %v131 = vld [vmem:[#allocation2 + $0x280] sm:$0xff]
    %v132 = vld [vmem:[#allocation2 + $0x288] sm:$0xff]
    %v133 = vld [vmem:[#allocation2 + $0x290] sm:$0xff]
    %v134 = vld [vmem:[#allocation2 + $0x298] sm:$0xff]
    %v135 = vld [vmem:[#allocation2 + $0x2a0] sm:$0xff]
    %v136 = vld [vmem:[#allocation2 + $0x2a8] sm:$0xff]
    %v137 = vld [vmem:[#allocation2 + $0x2b0] sm:$0xff]
    %v138 = vld [vmem:[#allocation2 + $0x2b8] sm:$0xff]
    %v139 = vld [vmem:[#allocation2 + $0x2c0] sm:$0xff]
    %v140 = vld [vmem:[#allocation2 + $0x2c8] sm:$0xff]
    %v141 = vld [vmem:[#allocation2 + $0x2d0] sm:$0xff]
    %v142 = vld [vmem:[#allocation2 + $0x2d8] sm:$0xff]
    %v143 = vld [vmem:[#allocation2 + $0x2e0] sm:$0xff]
    %v144 = vld [vmem:[#allocation2 + $0x2e8] sm:$0xff]
    %v145 = vld [vmem:[#allocation2 + $0x2f0] sm:$0xff]
    %v146 = vld [vmem:[#allocation2 + $0x2f8] sm:$0xff]
    %v147 = vld [vmem:[#allocation2 + $0x300] sm:$0xff]
    %v148 = vld [vmem:[#allocation2 + $0x308] sm:$0xff]
    %v149 = vld [vmem:[#allocation2 + $0x310] sm:$0xff]
    %v150 = vld [vmem:[#allocation2 + $0x318] sm:$0xff]
    %v151 = vld [vmem:[#allocation2 + $0x320] sm:$0xff]
    %v152 = vld [vmem:[#allocation2 + $0x328] sm:$0xff]
    %v153 = vld [vmem:[#allocation2 + $0x330] sm:$0xff]
    %v154 = vld [vmem:[#allocation2 + $0x338] sm:$0xff]
    %v155 = vld [vmem:[#allocation2 + $0x340] sm:$0xff]
    %v156 = vld [vmem:[#allocation2 + $0x348] sm:$0xff]
    %v157 = vld [vmem:[#allocation2 + $0x350] sm:$0xff]
    %v158 = vld [vmem:[#allocation2 + $0x358] sm:$0xff]
    %v159 = vld [vmem:[#allocation2 + $0x360] sm:$0xff]
    %v160 = vld [vmem:[#allocation2 + $0x368] sm:$0xff]
    %v161 = vld [vmem:[#allocation2 + $0x370] sm:$0xff]
    %v162 = vld [vmem:[#allocation2 + $0x378] sm:$0xff]
    %v163 = vld [vmem:[#allocation2 + $0x380] sm:$0xff]
    %v164 = vld [vmem:[#allocation2 + $0x388] sm:$0xff]
    %v165 = vld [vmem:[#allocation2 + $0x390] sm:$0xff]
    %v166 = vld [vmem:[#allocation2 + $0x398] sm:$0xff]
    %v167 = vld [vmem:[#allocation2 + $0x3a0] sm:$0xff]
    %v168 = vld [vmem:[#allocation2 + $0x3a8] sm:$0xff]
    %v169 = vld [vmem:[#allocation2 + $0x3b0] sm:$0xff]
    %v170 = vld [vmem:[#allocation2 + $0x3b8] sm:$0xff]
    %v171 = vld [vmem:[#allocation2 + $0x3c0] sm:$0xff]
    %v172 = vld [vmem:[#allocation2 + $0x3c8] sm:$0xff]
    %v173 = vld [vmem:[#allocation2 + $0x3d0] sm:$0xff]
    %v174 = vld [vmem:[#allocation2 + $0x3d8] sm:$0xff]
    %v175 = vld [vmem:[#allocation2 + $0x3e0] sm:$0xff]
    %v176 = vld [vmem:[#allocation2 + $0x3e8] sm:$0xff]
    %v177 = vld [vmem:[#allocation2 + $0x3f0] sm:$0xff]
    %v178 = vld [vmem:[#allocation2 + $0x3f8] sm:$0xff]
    %v179 = vld [vmem:[#allocation2 + $0x400] sm:$0xff]
    %v180 = vld [vmem:[#allocation2 + $0x408] sm:$0xff]
    %v181 = vld [vmem:[#allocation2 + $0x410] sm:$0xff]
    %v182 = vld [vmem:[#allocation2 + $0x418] sm:$0xff]
    %v183 = vld [vmem:[#allocation2 + $0x420] sm:$0xff]
    %v184 = vld [vmem:[#allocation2 + $0x428] sm:$0xff]
    %v185 = vld [vmem:[#allocation2 + $0x430] sm:$0xff]
    %v186 = vld [vmem:[#allocation2 + $0x438] sm:$0xff]
    %v187 = vld [vmem:[#allocation2 + $0x440] sm:$0xff]
    %v188 = vld [vmem:[#allocation2 + $0x448] sm:$0xff]
    %v189 = vld [vmem:[#allocation2 + $0x450] sm:$0xff]
    %v190 = vld [vmem:[#allocation2 + $0x458] sm:$0xff]
    %v191 = vld [vmem:[#allocation2 + $0x460] sm:$0xff]
    %v192 = vld [vmem:[#allocation2 + $0x468] sm:$0xff]
    %v193 = vld [vmem:[#allocation2 + $0x470] sm:$0xff]
    %v194 = vld [vmem:[#allocation2 + $0x478] sm:$0xff]
    %v195 = vld [vmem:[#allocation2 + $0x480] sm:$0xff]
    %v196 = vld [vmem:[#allocation2 + $0x488] sm:$0xff]
    %v197 = vld [vmem:[#allocation2 + $0x490] sm:$0xff]
    %v198 = vld [vmem:[#allocation2 + $0x498] sm:$0xff]
    %v199 = vld [vmem:[#allocation2 + $0x4a0] sm:$0xff]
    %v200 = vld [vmem:[#allocation2 + $0x4a8] sm:$0xff]
    %v201 = vld [vmem:[#allocation2 + $0x4b0] sm:$0xff]
    %v202 = vld [vmem:[#allocation2 + $0x4b8] sm:$0xff]
    %v203 = vld [vmem:[#allocation2 + $0x4c0] sm:$0xff]
    %v204 = vld [vmem:[#allocation2 + $0x4c8] sm:$0xff]
    %v205 = vld [vmem:[#allocation2 + $0x4d0] sm:$0xff]
    %v206 = vld [vmem:[#allocation2 + $0x4d8] sm:$0xff]
    %v207 = vld [vmem:[#allocation2 + $0x4e0] sm:$0xff]
    %v208 = vld [vmem:[#allocation2 + $0x4e8] sm:$0xff]
    %v209 = vld [vmem:[#allocation2 + $0x4f0] sm:$0xff]
    %v210 = vld [vmem:[#allocation2 + $0x4f8] sm:$0xff]
    %v211 = vld [vmem:[#allocation2 + $0x500] sm:$0xff]
    %v212 = vld [vmem:[#allocation2 + $0x508] sm:$0xff]
    %v213 = vld [vmem:[#allocation2 + $0x510] sm:$0xff]
    %v214 = vld [vmem:[#allocation2 + $0x518] sm:$0xff]
    %v215 = vld [vmem:[#allocation2 + $0x520] sm:$0xff]
    %v216 = vld [vmem:[#allocation2 + $0x528] sm:$0xff]
    %v217 = vld [vmem:[#allocation2 + $0x530] sm:$0xff]
    %v218 = vld [vmem:[#allocation2 + $0x538] sm:$0xff]
    %v219 = vld [vmem:[#allocation2 + $0x540] sm:$0xff]
    %v220 = vld [vmem:[#allocation2 + $0x548] sm:$0xff]
    %v221 = vld [vmem:[#allocation2 + $0x550] sm:$0xff]
    %v222 = vld [vmem:[#allocation2 + $0x558] sm:$0xff]
    %v223 = vld [vmem:[#allocation2 + $0x560] sm:$0xff]
    %v224 = vld [vmem:[#allocation2 + $0x568] sm:$0xff]
    %v225 = vld [vmem:[#allocation2 + $0x570] sm:$0xff]
    %v226 = vld [vmem:[#allocation2 + $0x578] sm:$0xff]
    %v227 = vld [vmem:[#allocation2 + $0x580] sm:$0xff]
    %v228 = vld [vmem:[#allocation2 + $0x588] sm:$0xff]
    %v229 = vld [vmem:[#allocation2 + $0x590] sm:$0xff]
    %v230 = vld [vmem:[#allocation2 + $0x598] sm:$0xff]
    %v231 = vld [vmem:[#allocation2 + $0x5a0] sm:$0xff]
    %v232 = vld [vmem:[#allocation2 + $0x5a8] sm:$0xff]
    %v233 = vld [vmem:[#allocation2 + $0x5b0] sm:$0xff]
    %v234 = vld [vmem:[#allocation2 + $0x5b8] sm:$0xff]
    %v235 = vld [vmem:[#allocation2 + $0x5c0] sm:$0xff]
    %v236 = vld [vmem:[#allocation2 + $0x5c8] sm:$0xff]
    %v237 = vld [vmem:[#allocation2 + $0x5d0] sm:$0xff]
    %v238 = vld [vmem:[#allocation2 + $0x5d8] sm:$0xff]
    %v239 = vld [vmem:[#allocation2 + $0x5e0] sm:$0xff]
    %v240 = vld [vmem:[#allocation2 + $0x5e8] sm:$0xff]
    %v241 = vld [vmem:[#allocation2 + $0x5f0] sm:$0xff]
    %v242 = vld [vmem:[#allocation2 + $0x5f8] sm:$0xff]
    %v243 = vld [vmem:[#allocation2 + $0x600] sm:$0xff]
    %v244 = vld [vmem:[#allocation2 + $0x608] sm:$0xff]
    %v245 = vld [vmem:[#allocation2 + $0x610] sm:$0xff]
    %v246 = vld [vmem:[#allocation2 + $0x618] sm:$0xff]
    %v247 = vld [vmem:[%s2] sm:$0x3]
    %v249 = vlaneseq
    %v250 = vshrl.u32 %v249, 7
    %v251 = vsub.s32 0, %v250
    %v252 = vrot.slane %v247, %v251
    %v253 = vlaneseq
    %v254 = vshrl.u32 %v253, 7
    %v255 = vsub.s32 1, %v254
    %v256 = vrot.slane %v247, %v255
    %v261 = vcombine.high %v49, %v49
    %v263 = vunpack.c.l.s4 1983009808
    %v264 = vunpack.c.0.s8 %v263
    %v265 = vlaneseq
    %v266 = vshrl.u32 %v265, 7
    %v267 = vsub.s32 %v264, %v266
    %v268 = vrot.slane %v49, %v267
    %v270 = vunpack.c.l.s4 1983009808
    %v271 = vunpack.c.0.s8 %v270
    %v272 = vlaneseq
    %v273 = vshrl.u32 %v272, 7
    %v274 = vsub.s32 %v271, %v273
    %v275 = vrot.slane %v261, %v274
    %v276 = vcombine.high %v268, %v268
    %v277 = vcombine.high %v275, %v275
    %v278 = vcombine.high %v50, %v50
    %v280 = vunpack.c.l.s4 1983009808
    %v281 = vunpack.c.0.s8 %v280
    %v282 = vlaneseq
    %v283 = vshrl.u32 %v282, 7
    %v284 = vsub.s32 %v281, %v283
    %v285 = vrot.slane %v50, %v284
    %v287 = vunpack.c.l.s4 1983009808
    %v288 = vunpack.c.0.s8 %v287
    %v289 = vlaneseq
    %v290 = vshrl.u32 %v289, 7
    %v291 = vsub.s32 %v288, %v290
    %v292 = vrot.slane %v278, %v291
    %v293 = vcombine.high %v285, %v285
    %vm300 = vcmask 130048
    %v301 = vsel %vm300, %v292, 0
    %303 = vmatprep.subr.mxu0 %v52
    %304 = vmatpush1.msra.mxu0 %v51
    %305 = vmatprep.subr.mxu0 %v54
    %306 = vmatpush1.msra.mxu0 %v53
    %307 = vmatprep.subr.mxu0 %v56
    %308 = vmatpush1.msra.mxu0 %v55
    %309 = vmatprep.subr.mxu0 %v58
    %310 = vmatpush1.msra.mxu0 %v57
    %311 = vmatprep.subr.mxu0 %v60
    %312 = vmatpush1.msra.mxu0 %v59
    %313 = vmatprep.subr.mxu0 %v62
    %314 = vmatpush1.msra.mxu0 %v61
    %315 = vmatprep.subr.mxu0 %v64
    %316 = vmatpush1.msra.mxu0 %v63
    %317 = vmatprep.subr.mxu0 %v66
    %318 = vmatpush1.msra.mxu0 %v65
    %319 = vmatprep.subr.mxu0 %v68
    %320 = vmatpush1.msra.mxu0 %v67
    %321 = vmatprep.subr.mxu0 %v70
    %322 = vmatpush1.msra.mxu0 %v69
    %323 = vmatprep.subr.mxu0 %v72
    %324 = vmatpush1.msra.mxu0 %v71
    %325 = vmatprep.subr.mxu0 %v74
    %326 = vmatpush1.msra.mxu0 %v73
    %327 = vmatprep.subr.mxu0 %v76
    %328 = vmatpush1.msra.mxu0 %v75
    %329 = vmatprep.subr.mxu0 %v78
    %330 = vmatpush1.msra.mxu0 %v77
    %331 = vmatprep.subr.mxu0 %v80
    %332 = vmatpush1.msra.mxu0 %v79
    %333 = vmatprep.subr.mxu0 %v82
    %334 = vmatpush1.msra.mxu0 %v81
    %335 = vmatprep.subr.mxu0 %v84
    %336 = vmatpush1.msra.mxu0 %v83
    %337 = vmatprep.subr.mxu0 %v86
    %338 = vmatpush1.msra.mxu0 %v85
    %339 = vmatprep.subr.mxu0 %v88
    %340 = vmatpush1.msra.mxu0 %v87
    %341 = vmatprep.subr.mxu0 %v90
    %342 = vmatpush1.msra.mxu0 %v89
    %343 = vmatprep.subr.mxu0 %v92
    %344 = vmatpush1.msra.mxu0 %v91
    %345 = vmatprep.subr.mxu0 %v94
    %346 = vmatpush1.msra.mxu0 %v93
    %347 = vmatprep.subr.mxu0 %v96
    %348 = vmatpush1.msra.mxu0 %v95
    %349 = vmatprep.subr.mxu0 %v98
    %350 = vmatpush1.msra.mxu0 %v97
    %351 = vmatprep.subr.mxu0 %v100
    %352 = vmatpush1.msra.mxu0 %v99
    %353 = vmatprep.subr.mxu0 %v102
    %354 = vmatpush1.msra.mxu0 %v101
    %355 = vmatprep.subr.mxu0 %v104
    %356 = vmatpush1.msra.mxu0 %v103
    %357 = vmatprep.subr.mxu0 %v106
    %358 = vmatpush1.msra.mxu0 %v105
    %359 = vmatprep.subr.mxu0 %v108
    %360 = vmatpush1.msra.mxu0 %v107
    %361 = vmatprep.subr.mxu0 %v110
    %362 = vmatpush1.msra.mxu0 %v109
    %363 = vmatprep.subr.mxu0 %v112
    %364 = vmatpush1.msra.mxu0 %v111
    %365 = vmatprep.subr.mxu0 %v114
    %366 = vmatpush1.msra.mxu0 %v113
    %367 = vmatprep.mubr.f32.mxu0 %v276
    %368 = vmatmul.mubr.f32.gmra.mrb[0].mxu0 %v268
    %v369 = vpop.f32.mrb[0].mxu0
    %v370 = vadd.f32 %v252, %v369
    %v371 = vpop.f32.mrb[0].mxu0
    %v372 = vadd.f32 %v256, %v371
    %373 = vdwg.mxu0
    %374 = vmatprep.subr.mxu0 %v116
    %375 = vmatpush1.msra.mxu0 %v115
    %376 = vmatprep.subr.mxu0 %v118
    %377 = vmatpush1.msra.mxu0 %v117
    %378 = vmatprep.subr.mxu0 %v120
    %379 = vmatpush1.msra.mxu0 %v119
    %380 = vmatprep.subr.mxu0 %v122
    %381 = vmatpush1.msra.mxu0 %v121
    %382 = vmatprep.subr.mxu0 %v124
    %383 = vmatpush1.msra.mxu0 %v123
    %384 = vmatprep.subr.mxu0 %v126
    %385 = vmatpush1.msra.mxu0 %v125
    %386 = vmatprep.subr.mxu0 %v128
    %387 = vmatpush1.msra.mxu0 %v127
    %388 = vmatprep.subr.mxu0 %v130
    %389 = vmatpush1.msra.mxu0 %v129
    %390 = vmatprep.subr.mxu0 %v132
    %391 = vmatpush1.msra.mxu0 %v131
    %392 = vmatprep.subr.mxu0 %v134
    %393 = vmatpush1.msra.mxu0 %v133
    %394 = vmatprep.subr.mxu0 %v136
    %395 = vmatpush1.msra.mxu0 %v135
    %396 = vmatprep.subr.mxu0 %v138
    %397 = vmatpush1.msra.mxu0 %v137
    %398 = vmatprep.subr.mxu0 %v140
    %399 = vmatpush1.msra.mxu0 %v139
    %400 = vmatprep.subr.mxu0 %v142
    %401 = vmatpush1.msra.mxu0 %v141
    %402 = vmatprep.subr.mxu0 %v144
    %403 = vmatpush1.msra.mxu0 %v143
    %404 = vmatprep.subr.mxu0 %v146
    %405 = vmatpush1.msra.mxu0 %v145
    %406 = vmatprep.subr.mxu0 %v148
    %407 = vmatpush1.msra.mxu0 %v147
    %408 = vmatprep.subr.mxu0 %v150
    %409 = vmatpush1.msra.mxu0 %v149
    %410 = vmatprep.subr.mxu0 %v152
    %411 = vmatpush1.msra.mxu0 %v151
    %412 = vmatprep.subr.mxu0 %v154
    %413 = vmatpush1.msra.mxu0 %v153
    %414 = vmatprep.subr.mxu0 %v156
    %415 = vmatpush1.msra.mxu0 %v155
    %416 = vmatprep.subr.mxu0 %v158
    %417 = vmatpush1.msra.mxu0 %v157
    %418 = vmatprep.subr.mxu0 %v160
    %419 = vmatpush1.msra.mxu0 %v159
    %420 = vmatprep.subr.mxu0 %v162
    %421 = vmatpush1.msra.mxu0 %v161
    %422 = vmatprep.subr.mxu0 %v164
    %423 = vmatpush1.msra.mxu0 %v163
    %424 = vmatprep.subr.mxu0 %v166
    %425 = vmatpush1.msra.mxu0 %v165
    %426 = vmatprep.subr.mxu0 %v168
    %427 = vmatpush1.msra.mxu0 %v167
    %428 = vmatprep.subr.mxu0 %v170
    %429 = vmatpush1.msra.mxu0 %v169
    %430 = vmatprep.subr.mxu0 %v172
    %431 = vmatpush1.msra.mxu0 %v171
    %432 = vmatprep.subr.mxu0 %v174
    %433 = vmatpush1.msra.mxu0 %v173
    %434 = vmatprep.subr.mxu0 %v176
    %435 = vmatpush1.msra.mxu0 %v175
    %436 = vmatprep.subr.mxu0 %v178
    %437 = vmatpush1.msra.mxu0 %v177
    %438 = vmatprep.mubr.f32.mxu0 %v277
    %439 = vmatmul.mubr.f32.gmra.mrb[0].mxu0 %v275
    %v440 = vpop.f32.mrb[0].mxu0
    %v441 = vadd.f32 %v370, %v440
    %v442 = vpop.f32.mrb[0].mxu0
    %v443 = vadd.f32 %v372, %v442
    %444 = vdwg.mxu0
    %445 = vmatprep.subr.mxu0 %v180
    %446 = vmatpush1.msra.mxu0 %v179
    %447 = vmatprep.subr.mxu0 %v182
    %448 = vmatpush1.msra.mxu0 %v181
    %449 = vmatprep.subr.mxu0 %v184
    %450 = vmatpush1.msra.mxu0 %v183
    %451 = vmatprep.subr.mxu0 %v186
    %452 = vmatpush1.msra.mxu0 %v185
    %453 = vmatprep.subr.mxu0 %v188
    %454 = vmatpush1.msra.mxu0 %v187
    %455 = vmatprep.subr.mxu0 %v190
    %456 = vmatpush1.msra.mxu0 %v189
    %457 = vmatprep.subr.mxu0 %v192
    %458 = vmatpush1.msra.mxu0 %v191
    %459 = vmatprep.subr.mxu0 %v194
    %460 = vmatpush1.msra.mxu0 %v193
    %461 = vmatprep.subr.mxu0 %v196
    %462 = vmatpush1.msra.mxu0 %v195
    %463 = vmatprep.subr.mxu0 %v198
    %464 = vmatpush1.msra.mxu0 %v197
    %465 = vmatprep.subr.mxu0 %v200
    %466 = vmatpush1.msra.mxu0 %v199
    %467 = vmatprep.subr.mxu0 %v202
    %468 = vmatpush1.msra.mxu0 %v201
    %469 = vmatprep.subr.mxu0 %v204
    %470 = vmatpush1.msra.mxu0 %v203
    %471 = vmatprep.subr.mxu0 %v206
    %472 = vmatpush1.msra.mxu0 %v205
    %473 = vmatprep.subr.mxu0 %v208
    %474 = vmatpush1.msra.mxu0 %v207
    %475 = vmatprep.subr.mxu0 %v210
    %476 = vmatpush1.msra.mxu0 %v209
    %477 = vmatprep.subr.mxu0 %v212
    %478 = vmatpush1.msra.mxu0 %v211
    %479 = vmatprep.subr.mxu0 %v214
    %480 = vmatpush1.msra.mxu0 %v213
    %481 = vmatprep.subr.mxu0 %v216
    %482 = vmatpush1.msra.mxu0 %v215
    %483 = vmatprep.subr.mxu0 %v218
    %484 = vmatpush1.msra.mxu0 %v217
    %485 = vmatprep.subr.mxu0 %v220
    %486 = vmatpush1.msra.mxu0 %v219
    %487 = vmatprep.subr.mxu0 %v222
    %488 = vmatpush1.msra.mxu0 %v221
    %489 = vmatprep.subr.mxu0 %v224
    %490 = vmatpush1.msra.mxu0 %v223
    %491 = vmatprep.subr.mxu0 %v226
    %492 = vmatpush1.msra.mxu0 %v225
    %493 = vmatprep.subr.mxu0 %v228
    %494 = vmatpush1.msra.mxu0 %v227
    %495 = vmatprep.subr.mxu0 %v230
    %496 = vmatpush1.msra.mxu0 %v229
    %497 = vmatprep.subr.mxu0 %v232
    %498 = vmatpush1.msra.mxu0 %v231
    %499 = vmatprep.subr.mxu0 %v234
    %500 = vmatpush1.msra.mxu0 %v233
    %501 = vmatprep.subr.mxu0 %v236
    %502 = vmatpush1.msra.mxu0 %v235
    %503 = vmatprep.subr.mxu0 %v238
    %504 = vmatpush1.msra.mxu0 %v237
    %505 = vmatprep.subr.mxu0 %v240
    %506 = vmatpush1.msra.mxu0 %v239
    %507 = vmatprep.subr.mxu0 %v242
    %508 = vmatpush1.msra.mxu0 %v241
    %509 = vmatprep.mubr.f32.mxu0 %v293
    %510 = vmatmul.mubr.f32.gmra.mrb[0].mxu0 %v285
    %v511 = vpop.f32.mrb[0].mxu0
    %v512 = vadd.f32 %v441, %v511
    %v513 = vpop.f32.mrb[0].mxu0
    %v514 = vadd.f32 %v443, %v513
    %515 = vdwg.mxu0
    %516 = vmatprep.subr.mxu0 %v244
    %517 = vmatpush1.msra.mxu0 %v243
    %518 = vmatprep.subr.mxu0 %v246
    %519 = vmatpush1.msra.mxu0 %v245
    %520 = vmatprep.subr.mxu0 0.0
    %521 = vmatpush1.msra.mxu0 0.0
    %522 = vmatprep.subr.mxu0 0.0
    %523 = vmatpush1.msra.mxu0 0.0
    %524 = vmatprep.subr.mxu0 0.0
    %525 = vmatpush1.msra.mxu0 0.0
    %526 = vmatprep.subr.mxu0 0.0
    %527 = vmatpush1.msra.mxu0 0.0
    %528 = vmatprep.subr.mxu0 0.0
    %529 = vmatpush1.msra.mxu0 0.0
    %530 = vmatprep.subr.mxu0 0.0
    %531 = vmatpush1.msra.mxu0 0.0
    %532 = vmatprep.subr.mxu0 0.0
    %533 = vmatpush1.msra.mxu0 0.0
    %534 = vmatprep.subr.mxu0 0.0
    %535 = vmatpush1.msra.mxu0 0.0
    %536 = vmatprep.subr.mxu0 0.0
    %537 = vmatpush1.msra.mxu0 0.0
    %538 = vmatprep.subr.mxu0 0.0
    %539 = vmatpush1.msra.mxu0 0.0
    %540 = vmatprep.subr.mxu0 0.0
    %541 = vmatpush1.msra.mxu0 0.0
    %542 = vmatprep.subr.mxu0 0.0
    %543 = vmatpush1.msra.mxu0 0.0
    %544 = vmatprep.subr.mxu0 0.0
    %545 = vmatpush1.msra.mxu0 0.0
    %546 = vmatprep.subr.mxu0 0.0
    %547 = vmatpush1.msra.mxu0 0.0
    %548 = vmatprep.subr.mxu0 0.0
    %549 = vmatpush1.msra.mxu0 0.0
    %550 = vmatprep.subr.mxu0 0.0
    %551 = vmatpush1.msra.mxu0 0.0
    %552 = vmatprep.subr.mxu0 0.0
    %553 = vmatpush1.msra.mxu0 0.0
    %554 = vmatprep.subr.mxu0 0.0
    %555 = vmatpush1.msra.mxu0 0.0
    %556 = vmatprep.subr.mxu0 0.0
    %557 = vmatpush1.msra.mxu0 0.0
    %558 = vmatprep.subr.mxu0 0.0
    %559 = vmatpush1.msra.mxu0 0.0
    %560 = vmatprep.subr.mxu0 0.0
    %561 = vmatpush1.msra.mxu0 0.0
    %562 = vmatprep.subr.mxu0 0.0
    %563 = vmatpush1.msra.mxu0 0.0
    %564 = vmatprep.subr.mxu0 0.0
    %565 = vmatpush1.msra.mxu0 0.0
    %566 = vmatprep.subr.mxu0 0.0
    %567 = vmatpush1.msra.mxu0 0.0
    %568 = vmatprep.subr.mxu0 0.0
    %569 = vmatpush1.msra.mxu0 0.0
    %570 = vmatprep.subr.mxu0 0.0
    %571 = vmatpush1.msra.mxu0 0.0
    %572 = vmatprep.subr.mxu0 0.0
    %573 = vmatpush1.msra.mxu0 0.0
    %574 = vmatprep.subr.mxu0 0.0
    %575 = vmatpush1.msra.mxu0 0.0
    %576 = vmatprep.subr.mxu0 0.0
    %577 = vmatpush1.msra.mxu0 0.0
    %578 = vmatprep.subr.mxu0 0.0
    %579 = vmatpush1.msra.mxu0 0.0
    %580 = vmatprep.mubr.f32.mxu0 0.0
    %581 = vmatmul.mubr.f32.gmra.mrb[0].mxu0 %v301
    %v582 = vpop.f32.mrb[0].mxu0
    %v583 = vadd.f32 %v512, %v582
    %v584 = vpop.f32.mrb[0].mxu0
    %v585 = vadd.f32 %v514, %v584
    %586 = vdwg.mxu0
    %v587 = vmax.f32 %v583, 0.0
    %v588 = vmax.f32 %v585, 0.0
    %v589 = vld [vmem:[#allocation5] sm:$0xff]
    %v590 = vld [vmem:[#allocation5 + $0x8] sm:$0xff]
    %v591 = vld [vmem:[#allocation5 + $0x10] sm:$0xff]
    %v592 = vld [vmem:[#allocation5 + $0x18] sm:$0xff]
    %v593 = vld [vmem:[#allocation5 + $0x20] sm:$0xff]
    %v594 = vld [vmem:[#allocation5 + $0x28] sm:$0xff]
    %v595 = vld [vmem:[#allocation5 + $0x30] sm:$0xff]
    %v596 = vld [vmem:[#allocation5 + $0x38] sm:$0xff]
    %v597 = vld [vmem:[#allocation5 + $0x40] sm:$0xff]
    %v598 = vld [vmem:[#allocation5 + $0x48] sm:$0xff]
    %v599 = vld [vmem:[#allocation5 + $0x50] sm:$0xff]
    %v600 = vld [vmem:[#allocation5 + $0x58] sm:$0xff]
    %v601 = vld [vmem:[#allocation5 + $0x60] sm:$0xff]
    %v602 = vld [vmem:[#allocation5 + $0x68] sm:$0xff]
    %v603 = vld [vmem:[#allocation5 + $0x70] sm:$0xff]
    %v604 = vld [vmem:[#allocation5 + $0x78] sm:$0xff]
    %v605 = vld [vmem:[#allocation5 + $0x80] sm:$0xff]
    %v606 = vld [vmem:[#allocation5 + $0x88] sm:$0xff]
    %v607 = vld [vmem:[#allocation5 + $0x90] sm:$0xff]
    %v608 = vld [vmem:[#allocation5 + $0x98] sm:$0xff]
    %v609 = vld [vmem:[#allocation5 + $0xa0] sm:$0xff]
    %v610 = vld [vmem:[#allocation5 + $0xa8] sm:$0xff]
    %v611 = vld [vmem:[#allocation5 + $0xb0] sm:$0xff]
    %v612 = vld [vmem:[#allocation5 + $0xb8] sm:$0xff]
    %v613 = vld [vmem:[#allocation5 + $0xc0] sm:$0xff]
    %v614 = vld [vmem:[#allocation5 + $0xc8] sm:$0xff]
    %v615 = vld [vmem:[#allocation5 + $0xd0] sm:$0xff]
    %v616 = vld [vmem:[#allocation5 + $0xd8] sm:$0xff]
    %v617 = vld [vmem:[#allocation5 + $0xe0] sm:$0xff]
    %v618 = vld [vmem:[#allocation5 + $0xe8] sm:$0xff]
    %v619 = vld [vmem:[#allocation5 + $0xf0] sm:$0xff]
    %v620 = vld [vmem:[#allocation5 + $0xf8] sm:$0xff]
    %v621 = vld [vmem:[#allocation5 + $0x100] sm:$0xff]
    %v622 = vld [vmem:[#allocation5 + $0x108] sm:$0xff]
    %v623 = vld [vmem:[#allocation5 + $0x110] sm:$0xff]
    %v624 = vld [vmem:[#allocation5 + $0x118] sm:$0xff]
    %v625 = vld [vmem:[#allocation5 + $0x120] sm:$0xff]
    %v626 = vld [vmem:[#allocation5 + $0x128] sm:$0xff]
    %v627 = vld [vmem:[#allocation5 + $0x130] sm:$0xff]
    %v628 = vld [vmem:[#allocation5 + $0x138] sm:$0xff]
    %v629 = vld [vmem:[#allocation5 + $0x140] sm:$0xff]
    %v630 = vld [vmem:[#allocation5 + $0x148] sm:$0xff]
    %v631 = vld [vmem:[#allocation5 + $0x150] sm:$0xff]
    %v632 = vld [vmem:[#allocation5 + $0x158] sm:$0xff]
    %v633 = vld [vmem:[#allocation5 + $0x160] sm:$0xff]
    %v634 = vld [vmem:[#allocation5 + $0x168] sm:$0xff]
    %v635 = vld [vmem:[#allocation5 + $0x170] sm:$0xff]
    %v636 = vld [vmem:[#allocation5 + $0x178] sm:$0xff]
    %v637 = vld [vmem:[#allocation5 + $0x180] sm:$0xff]
    %v638 = vld [vmem:[#allocation5 + $0x188] sm:$0xff]
    %v639 = vld [vmem:[#allocation5 + $0x190] sm:$0xff]
    %v640 = vld [vmem:[#allocation5 + $0x198] sm:$0xff]
    %v641 = vld [vmem:[#allocation5 + $0x1a0] sm:$0xff]
    %v642 = vld [vmem:[#allocation5 + $0x1a8] sm:$0xff]
    %v643 = vld [vmem:[#allocation5 + $0x1b0] sm:$0xff]
    %v644 = vld [vmem:[#allocation5 + $0x1b8] sm:$0xff]
    %v645 = vld [vmem:[#allocation5 + $0x1c0] sm:$0xff]
    %v646 = vld [vmem:[#allocation5 + $0x1c8] sm:$0xff]
    %v647 = vld [vmem:[#allocation5 + $0x1d0] sm:$0xff]
    %v648 = vld [vmem:[#allocation5 + $0x1d8] sm:$0xff]
    %v649 = vld [vmem:[#allocation5 + $0x1e0] sm:$0xff]
    %v650 = vld [vmem:[#allocation5 + $0x1e8] sm:$0xff]
    %v651 = vld [vmem:[#allocation5 + $0x1f0] sm:$0xff]
    %v652 = vld [vmem:[#allocation5 + $0x1f8] sm:$0xff]
    %v653 = vld [vmem:[#allocation5 + $0x200] sm:$0xff]
    %v654 = vld [vmem:[#allocation5 + $0x208] sm:$0xff]
    %v655 = vld [vmem:[#allocation5 + $0x210] sm:$0xff]
    %v656 = vld [vmem:[#allocation5 + $0x218] sm:$0xff]
    %v657 = vld [vmem:[#allocation5 + $0x220] sm:$0xff]
    %v658 = vld [vmem:[#allocation5 + $0x228] sm:$0xff]
    %v659 = vld [vmem:[#allocation5 + $0x230] sm:$0xff]
    %v660 = vld [vmem:[#allocation5 + $0x238] sm:$0xff]
    %v661 = vld [vmem:[#allocation5 + $0x240] sm:$0xff]
    %v662 = vld [vmem:[#allocation5 + $0x248] sm:$0xff]
    %v663 = vld [vmem:[#allocation5 + $0x250] sm:$0xff]
    %v664 = vld [vmem:[#allocation5 + $0x258] sm:$0xff]
    %v665 = vld [vmem:[#allocation5 + $0x260] sm:$0xff]
    %v666 = vld [vmem:[#allocation5 + $0x268] sm:$0xff]
    %v667 = vld [vmem:[#allocation5 + $0x270] sm:$0xff]
    %v668 = vld [vmem:[#allocation5 + $0x278] sm:$0xff]
    %v669 = vld [vmem:[#allocation5 + $0x280] sm:$0xff]
    %v670 = vld [vmem:[#allocation5 + $0x288] sm:$0xff]
    %v671 = vld [vmem:[#allocation5 + $0x290] sm:$0xff]
    %v672 = vld [vmem:[#allocation5 + $0x298] sm:$0xff]
    %v673 = vld [vmem:[#allocation5 + $0x2a0] sm:$0xff]
    %v674 = vld [vmem:[#allocation5 + $0x2a8] sm:$0xff]
    %v675 = vld [vmem:[#allocation5 + $0x2b0] sm:$0xff]
    %v676 = vld [vmem:[#allocation5 + $0x2b8] sm:$0xff]
    %v677 = vld [vmem:[#allocation5 + $0x2c0] sm:$0xff]
    %v678 = vld [vmem:[#allocation5 + $0x2c8] sm:$0xff]
    %v679 = vld [vmem:[#allocation5 + $0x2d0] sm:$0xff]
    %v680 = vld [vmem:[#allocation5 + $0x2d8] sm:$0xff]
    %v681 = vld [vmem:[#allocation5 + $0x2e0] sm:$0xff]
    %v682 = vld [vmem:[#allocation5 + $0x2e8] sm:$0xff]
    %v683 = vld [vmem:[#allocation5 + $0x2f0] sm:$0xff]
    %v684 = vld [vmem:[#allocation5 + $0x2f8] sm:$0xff]
    %v685 = vld [vmem:[#allocation5 + $0x300] sm:$0xff]
    %v686 = vld [vmem:[#allocation5 + $0x308] sm:$0xff]
    %v687 = vld [vmem:[#allocation5 + $0x310] sm:$0xff]
    %v688 = vld [vmem:[#allocation5 + $0x318] sm:$0xff]
    %v689 = vld [vmem:[#allocation5 + $0x320] sm:$0xff]
    %v690 = vld [vmem:[#allocation5 + $0x328] sm:$0xff]
    %v691 = vld [vmem:[#allocation5 + $0x330] sm:$0xff]
    %v692 = vld [vmem:[#allocation5 + $0x338] sm:$0xff]
    %v693 = vld [vmem:[#allocation5 + $0x340] sm:$0xff]
    %v694 = vld [vmem:[#allocation5 + $0x348] sm:$0xff]
    %v695 = vld [vmem:[#allocation5 + $0x350] sm:$0xff]
    %v696 = vld [vmem:[#allocation5 + $0x358] sm:$0xff]
    %v697 = vld [vmem:[#allocation5 + $0x360] sm:$0xff]
    %v698 = vld [vmem:[#allocation5 + $0x368] sm:$0xff]
    %v699 = vld [vmem:[#allocation5 + $0x370] sm:$0xff]
    %v700 = vld [vmem:[#allocation5 + $0x378] sm:$0xff]
    %v701 = vld [vmem:[#allocation5 + $0x380] sm:$0xff]
    %v702 = vld [vmem:[#allocation5 + $0x388] sm:$0xff]
    %v703 = vld [vmem:[#allocation5 + $0x390] sm:$0xff]
    %v704 = vld [vmem:[#allocation5 + $0x398] sm:$0xff]
    %v705 = vld [vmem:[#allocation5 + $0x3a0] sm:$0xff]
    %v706 = vld [vmem:[#allocation5 + $0x3a8] sm:$0xff]
    %v707 = vld [vmem:[#allocation5 + $0x3b0] sm:$0xff]
    %v708 = vld [vmem:[#allocation5 + $0x3b8] sm:$0xff]
    %v709 = vld [vmem:[#allocation5 + $0x3c0] sm:$0xff]
    %v710 = vld [vmem:[#allocation5 + $0x3c8] sm:$0xff]
    %v711 = vld [vmem:[#allocation5 + $0x3d0] sm:$0xff]
    %v712 = vld [vmem:[#allocation5 + $0x3d8] sm:$0xff]
    %v713 = vld [vmem:[#allocation5 + $0x3e0] sm:$0xff]
    %v714 = vld [vmem:[#allocation5 + $0x3e8] sm:$0xff]
    %v715 = vld [vmem:[#allocation5 + $0x3f0] sm:$0xff]
    %v716 = vld [vmem:[#allocation5 + $0x3f8] sm:$0xff]
    %v717 = vunpack.c.l.bf16 %v589
    %v718 = vunpack.c.h.bf16 %v589
    %v719 = vunpack.c.l.bf16 %v590
    %v720 = vunpack.c.h.bf16 %v590
    %v721 = vunpack.c.l.bf16 %v591
    %v722 = vunpack.c.h.bf16 %v591
    %v723 = vunpack.c.l.bf16 %v592
    %v724 = vunpack.c.h.bf16 %v592
    %v725 = vunpack.c.l.bf16 %v593
    %v726 = vunpack.c.h.bf16 %v593
    %v727 = vunpack.c.l.bf16 %v594
    %v728 = vunpack.c.h.bf16 %v594
    %v729 = vunpack.c.l.bf16 %v595
    %v730 = vunpack.c.h.bf16 %v595
    %v731 = vunpack.c.l.bf16 %v596
    %v732 = vunpack.c.h.bf16 %v596
    %v733 = vunpack.c.l.bf16 %v597
    %v734 = vunpack.c.h.bf16 %v597
    %v735 = vunpack.c.l.bf16 %v598
    %v736 = vunpack.c.h.bf16 %v598
    %v737 = vunpack.c.l.bf16 %v599
    %v738 = vunpack.c.h.bf16 %v599
    %v739 = vunpack.c.l.bf16 %v600
    %v740 = vunpack.c.h.bf16 %v600
    %v741 = vunpack.c.l.bf16 %v601
    %v742 = vunpack.c.h.bf16 %v601
    %v743 = vunpack.c.l.bf16 %v602
    %v744 = vunpack.c.h.bf16 %v602
    %v745 = vunpack.c.l.bf16 %v603
    %v746 = vunpack.c.h.bf16 %v603
    %v747 = vunpack.c.l.bf16 %v604
    %v748 = vunpack.c.h.bf16 %v604
    %v749 = vunpack.c.l.bf16 %v605
    %v750 = vunpack.c.h.bf16 %v605
    %v751 = vunpack.c.l.bf16 %v606
    %v752 = vunpack.c.h.bf16 %v606
    %v753 = vunpack.c.l.bf16 %v607
    %v754 = vunpack.c.h.bf16 %v607
    %v755 = vunpack.c.l.bf16 %v608
    %v756 = vunpack.c.h.bf16 %v608
    %v757 = vunpack.c.l.bf16 %v609
    %v758 = vunpack.c.h.bf16 %v609
    %v759 = vunpack.c.l.bf16 %v610
    %v760 = vunpack.c.h.bf16 %v610
    %v761 = vunpack.c.l.bf16 %v611
    %v762 = vunpack.c.h.bf16 %v611
    %v763 = vunpack.c.l.bf16 %v612
    %v764 = vunpack.c.h.bf16 %v612
    %v765 = vunpack.c.l.bf16 %v613
    %v766 = vunpack.c.h.bf16 %v613
    %v767 = vunpack.c.l.bf16 %v614
    %v768 = vunpack.c.h.bf16 %v614
    %v769 = vunpack.c.l.bf16 %v615
    %v770 = vunpack.c.h.bf16 %v615
    %v771 = vunpack.c.l.bf16 %v616
    %v772 = vunpack.c.h.bf16 %v616
    %v773 = vunpack.c.l.bf16 %v617
    %v774 = vunpack.c.h.bf16 %v617
    %v775 = vunpack.c.l.bf16 %v618
    %v776 = vunpack.c.h.bf16 %v618
    %v777 = vunpack.c.l.bf16 %v619
    %v778 = vunpack.c.h.bf16 %v619
    %v779 = vunpack.c.l.bf16 %v620
    %v780 = vunpack.c.h.bf16 %v620
    %v781 = vunpack.c.l.bf16 %v621
    %v782 = vunpack.c.h.bf16 %v621
    %v783 = vunpack.c.l.bf16 %v622
    %v784 = vunpack.c.h.bf16 %v622
    %v785 = vunpack.c.l.bf16 %v623
    %v786 = vunpack.c.h.bf16 %v623
    %v787 = vunpack.c.l.bf16 %v624
    %v788 = vunpack.c.h.bf16 %v624
    %v789 = vunpack.c.l.bf16 %v625
    %v790 = vunpack.c.h.bf16 %v625
    %v791 = vunpack.c.l.bf16 %v626
    %v792 = vunpack.c.h.bf16 %v626
    %v793 = vunpack.c.l.bf16 %v627
    %v794 = vunpack.c.h.bf16 %v627
    %v795 = vunpack.c.l.bf16 %v628
    %v796 = vunpack.c.h.bf16 %v628
    %v797 = vunpack.c.l.bf16 %v629
    %v798 = vunpack.c.h.bf16 %v629
    %v799 = vunpack.c.l.bf16 %v630
    %v800 = vunpack.c.h.bf16 %v630
    %v801 = vunpack.c.l.bf16 %v631
    %v802 = vunpack.c.h.bf16 %v631
    %v803 = vunpack.c.l.bf16 %v632
    %v804 = vunpack.c.h.bf16 %v632
    %v805 = vunpack.c.l.bf16 %v633
    %v806 = vunpack.c.h.bf16 %v633
    %v807 = vunpack.c.l.bf16 %v634
    %v808 = vunpack.c.h.bf16 %v634
    %v809 = vunpack.c.l.bf16 %v635
    %v810 = vunpack.c.h.bf16 %v635
    %v811 = vunpack.c.l.bf16 %v636
    %v812 = vunpack.c.h.bf16 %v636
    %v813 = vunpack.c.l.bf16 %v637
    %v814 = vunpack.c.h.bf16 %v637
    %v815 = vunpack.c.l.bf16 %v638
    %v816 = vunpack.c.h.bf16 %v638
    %v817 = vunpack.c.l.bf16 %v639
    %v818 = vunpack.c.h.bf16 %v639
    %v819 = vunpack.c.l.bf16 %v640
    %v820 = vunpack.c.h.bf16 %v640
    %v821 = vunpack.c.l.bf16 %v641
    %v822 = vunpack.c.h.bf16 %v641
    %v823 = vunpack.c.l.bf16 %v642
    %v824 = vunpack.c.h.bf16 %v642
    %v825 = vunpack.c.l.bf16 %v643
    %v826 = vunpack.c.h.bf16 %v643
    %v827 = vunpack.c.l.bf16 %v644
    %v828 = vunpack.c.h.bf16 %v644
    %v829 = vunpack.c.l.bf16 %v645
    %v830 = vunpack.c.h.bf16 %v645
    %v831 = vunpack.c.l.bf16 %v646
    %v832 = vunpack.c.h.bf16 %v646
    %v833 = vunpack.c.l.bf16 %v647
    %v834 = vunpack.c.h.bf16 %v647
    %v835 = vunpack.c.l.bf16 %v648
    %v836 = vunpack.c.h.bf16 %v648
    %v837 = vunpack.c.l.bf16 %v649
    %v838 = vunpack.c.h.bf16 %v649
    %v839 = vunpack.c.l.bf16 %v650
    %v840 = vunpack.c.h.bf16 %v650
    %v841 = vunpack.c.l.bf16 %v651
    %v842 = vunpack.c.h.bf16 %v651
    %v843 = vunpack.c.l.bf16 %v652
    %v844 = vunpack.c.h.bf16 %v652
    %v845 = vunpack.c.l.bf16 %v653
    %v846 = vunpack.c.h.bf16 %v653
    %v847 = vunpack.c.l.bf16 %v654
    %v848 = vunpack.c.h.bf16 %v654
    %v849 = vunpack.c.l.bf16 %v655
    %v850 = vunpack.c.h.bf16 %v655
    %v851 = vunpack.c.l.bf16 %v656
    %v852 = vunpack.c.h.bf16 %v656
    %v853 = vunpack.c.l.bf16 %v657
    %v854 = vunpack.c.h.bf16 %v657
    %v855 = vunpack.c.l.bf16 %v658
    %v856 = vunpack.c.h.bf16 %v658
    %v857 = vunpack.c.l.bf16 %v659
    %v858 = vunpack.c.h.bf16 %v659
    %v859 = vunpack.c.l.bf16 %v660
    %v860 = vunpack.c.h.bf16 %v660
    %v861 = vunpack.c.l.bf16 %v661
    %v862 = vunpack.c.h.bf16 %v661
    %v863 = vunpack.c.l.bf16 %v662
    %v864 = vunpack.c.h.bf16 %v662
    %v865 = vunpack.c.l.bf16 %v663
    %v866 = vunpack.c.h.bf16 %v663
    %v867 = vunpack.c.l.bf16 %v664
    %v868 = vunpack.c.h.bf16 %v664
    %v869 = vunpack.c.l.bf16 %v665
    %v870 = vunpack.c.h.bf16 %v665
    %v871 = vunpack.c.l.bf16 %v666
    %v872 = vunpack.c.h.bf16 %v666
    %v873 = vunpack.c.l.bf16 %v667
    %v874 = vunpack.c.h.bf16 %v667
    %v875 = vunpack.c.l.bf16 %v668
    %v876 = vunpack.c.h.bf16 %v668
    %v877 = vunpack.c.l.bf16 %v669
    %v878 = vunpack.c.h.bf16 %v669
    %v879 = vunpack.c.l.bf16 %v670
    %v880 = vunpack.c.h.bf16 %v670
    %v881 = vunpack.c.l.bf16 %v671
    %v882 = vunpack.c.h.bf16 %v671
    %v883 = vunpack.c.l.bf16 %v672
    %v884 = vunpack.c.h.bf16 %v672
    %v885 = vunpack.c.l.bf16 %v673
    %v886 = vunpack.c.h.bf16 %v673
    %v887 = vunpack.c.l.bf16 %v674
    %v888 = vunpack.c.h.bf16 %v674
    %v889 = vunpack.c.l.bf16 %v675
    %v890 = vunpack.c.h.bf16 %v675
    %v891 = vunpack.c.l.bf16 %v676
    %v892 = vunpack.c.h.bf16 %v676
    %v893 = vunpack.c.l.bf16 %v677
    %v894 = vunpack.c.h.bf16 %v677
    %v895 = vunpack.c.l.bf16 %v678
    %v896 = vunpack.c.h.bf16 %v678
    %v897 = vunpack.c.l.bf16 %v679
    %v898 = vunpack.c.h.bf16 %v679
    %v899 = vunpack.c.l.bf16 %v680
    %v900 = vunpack.c.h.bf16 %v680
    %v901 = vunpack.c.l.bf16 %v681
    %v902 = vunpack.c.h.bf16 %v681
    %v903 = vunpack.c.l.bf16 %v682
    %v904 = vunpack.c.h.bf16 %v682
    %v905 = vunpack.c.l.bf16 %v683
    %v906 = vunpack.c.h.bf16 %v683
    %v907 = vunpack.c.l.bf16 %v684
    %v908 = vunpack.c.h.bf16 %v684
    %v909 = vunpack.c.l.bf16 %v685
    %v910 = vunpack.c.h.bf16 %v685
    %v911 = vunpack.c.l.bf16 %v686
    %v912 = vunpack.c.h.bf16 %v686
    %v913 = vunpack.c.l.bf16 %v687
    %v914 = vunpack.c.h.bf16 %v687
    %v915 = vunpack.c.l.bf16 %v688
    %v916 = vunpack.c.h.bf16 %v688
    %v917 = vunpack.c.l.bf16 %v689
    %v918 = vunpack.c.h.bf16 %v689
    %v919 = vunpack.c.l.bf16 %v690
    %v920 = vunpack.c.h.bf16 %v690
    %v921 = vunpack.c.l.bf16 %v691
    %v922 = vunpack.c.h.bf16 %v691
    %v923 = vunpack.c.l.bf16 %v692
    %v924 = vunpack.c.h.bf16 %v692
    %v925 = vunpack.c.l.bf16 %v693
    %v926 = vunpack.c.h.bf16 %v693
    %v927 = vunpack.c.l.bf16 %v694
    %v928 = vunpack.c.h.bf16 %v694
    %v929 = vunpack.c.l.bf16 %v695
    %v930 = vunpack.c.h.bf16 %v695
    %v931 = vunpack.c.l.bf16 %v696
    %v932 = vunpack.c.h.bf16 %v696
    %v933 = vunpack.c.l.bf16 %v697
    %v934 = vunpack.c.h.bf16 %v697
    %v935 = vunpack.c.l.bf16 %v698
    %v936 = vunpack.c.h.bf16 %v698
    %v937 = vunpack.c.l.bf16 %v699
    %v938 = vunpack.c.h.bf16 %v699
    %v939 = vunpack.c.l.bf16 %v700
    %v940 = vunpack.c.h.bf16 %v700
    %v941 = vunpack.c.l.bf16 %v701
    %v942 = vunpack.c.h.bf16 %v701
    %v943 = vunpack.c.l.bf16 %v702
    %v944 = vunpack.c.h.bf16 %v702
    %v945 = vunpack.c.l.bf16 %v703
    %v946 = vunpack.c.h.bf16 %v703
    %v947 = vunpack.c.l.bf16 %v704
    %v948 = vunpack.c.h.bf16 %v704
    %v949 = vunpack.c.l.bf16 %v705
    %v950 = vunpack.c.h.bf16 %v705
    %v951 = vunpack.c.l.bf16 %v706
    %v952 = vunpack.c.h.bf16 %v706
    %v953 = vunpack.c.l.bf16 %v707
    %v954 = vunpack.c.h.bf16 %v707
    %v955 = vunpack.c.l.bf16 %v708
    %v956 = vunpack.c.h.bf16 %v708
    %v957 = vunpack.c.l.bf16 %v709
    %v958 = vunpack.c.h.bf16 %v709
    %v959 = vunpack.c.l.bf16 %v710
    %v960 = vunpack.c.h.bf16 %v710
    %v961 = vunpack.c.l.bf16 %v711
    %v962 = vunpack.c.h.bf16 %v711
    %v963 = vunpack.c.l.bf16 %v712
    %v964 = vunpack.c.h.bf16 %v712
    %v965 = vunpack.c.l.bf16 %v713
    %v966 = vunpack.c.h.bf16 %v713
    %v967 = vunpack.c.l.bf16 %v714
    %v968 = vunpack.c.h.bf16 %v714
    %v969 = vunpack.c.l.bf16 %v715
    %v970 = vunpack.c.h.bf16 %v715
    %v971 = vunpack.c.l.bf16 %v716
    %v972 = vunpack.c.h.bf16 %v716
    %973 = vmatprep.subr.mxu0 %v718
    %974 = vmatpush1.msra.mxu0 %v717
    %975 = vmatprep.subr.mxu0 %v726
    %976 = vmatpush1.msra.mxu0 %v725
    %977 = vmatprep.subr.mxu0 %v734
    %978 = vmatpush1.msra.mxu0 %v733
    %979 = vmatprep.subr.mxu0 %v742
    %980 = vmatpush1.msra.mxu0 %v741
    %981 = vmatprep.subr.mxu0 %v750
    %982 = vmatpush1.msra.mxu0 %v749
    %983 = vmatprep.subr.mxu0 %v758
    %984 = vmatpush1.msra.mxu0 %v757
    %985 = vmatprep.subr.mxu0 %v766
    %986 = vmatpush1.msra.mxu0 %v765
    %987 = vmatprep.subr.mxu0 %v774
    %988 = vmatpush1.msra.mxu0 %v773
    %989 = vmatprep.subr.mxu0 %v782
    %990 = vmatpush1.msra.mxu0 %v781
    %991 = vmatprep.subr.mxu0 %v790
    %992 = vmatpush1.msra.mxu0 %v789
    %993 = vmatprep.subr.mxu0 %v798
    %994 = vmatpush1.msra.mxu0 %v797
    %995 = vmatprep.subr.mxu0 %v806
    %996 = vmatpush1.msra.mxu0 %v805
    %997 = vmatprep.subr.mxu0 %v814
    %998 = vmatpush1.msra.mxu0 %v813
    %999 = vmatprep.subr.mxu0 %v822
    %1000 = vmatpush1.msra.mxu0 %v821
    %1001 = vmatprep.subr.mxu0 %v830
    %1002 = vmatpush1.msra.mxu0 %v829
    %1003 = vmatprep.subr.mxu0 %v838
    %1004 = vmatpush1.msra.mxu0 %v837
    %1005 = vmatprep.subr.mxu0 %v846
    %1006 = vmatpush1.msra.mxu0 %v845
    %1007 = vmatprep.subr.mxu0 %v854
    %1008 = vmatpush1.msra.mxu0 %v853
    %1009 = vmatprep.subr.mxu0 %v862
    %1010 = vmatpush1.msra.mxu0 %v861
    %1011 = vmatprep.subr.mxu0 %v870
    %1012 = vmatpush1.msra.mxu0 %v869
    %1013 = vmatprep.subr.mxu0 %v878
    %1014 = vmatpush1.msra.mxu0 %v877
    %1015 = vmatprep.subr.mxu0 %v886
    %1016 = vmatpush1.msra.mxu0 %v885
    %1017 = vmatprep.subr.mxu0 %v894
    %1018 = vmatpush1.msra.mxu0 %v893
    %1019 = vmatprep.subr.mxu0 %v902
    %1020 = vmatpush1.msra.mxu0 %v901
    %1021 = vmatprep.subr.mxu0 %v910
    %1022 = vmatpush1.msra.mxu0 %v909
    %1023 = vmatprep.subr.mxu0 %v918
    %1024 = vmatpush1.msra.mxu0 %v917
    %1025 = vmatprep.subr.mxu0 %v926
    %1026 = vmatpush1.msra.mxu0 %v925
    %1027 = vmatprep.subr.mxu0 %v934
    %1028 = vmatpush1.msra.mxu0 %v933
    %1029 = vmatprep.subr.mxu0 %v942
    %1030 = vmatpush1.msra.mxu0 %v941
    %1031 = vmatprep.subr.mxu0 %v950
    %1032 = vmatpush1.msra.mxu0 %v949
    %1033 = vmatprep.subr.mxu0 %v958
    %1034 = vmatpush1.msra.mxu0 %v957
    %1035 = vmatprep.subr.mxu0 %v966
    %1036 = vmatpush1.msra.mxu0 %v965
    %1037 = vmatprep.mubr.f32.mxu0 %v588
    %1038 = vmatmul.mubr.f32.gmra.mrb[0].mxu0 %v587
    %v1039 = vpop.f32.mrb[0].mxu0
    %v1040 = vadd.f32 0.0, %v1039
    %v1041 = vpop.f32.mrb[0].mxu0
    %v1042 = vadd.f32 0.0, %v1041
    %1043 = vdwg.mxu0
    %1044 = vmatprep.subr.mxu0 %v720
    %1045 = vmatpush1.msra.mxu0 %v719
    %1046 = vmatprep.subr.mxu0 %v728
    %1047 = vmatpush1.msra.mxu0 %v727
    %1048 = vmatprep.subr.mxu0 %v736
    %1049 = vmatpush1.msra.mxu0 %v735
    %1050 = vmatprep.subr.mxu0 %v744
    %1051 = vmatpush1.msra.mxu0 %v743
    %1052 = vmatprep.subr.mxu0 %v752
    %1053 = vmatpush1.msra.mxu0 %v751
    %1054 = vmatprep.subr.mxu0 %v760
    %1055 = vmatpush1.msra.mxu0 %v759
    %1056 = vmatprep.subr.mxu0 %v768
    %1057 = vmatpush1.msra.mxu0 %v767
    %1058 = vmatprep.subr.mxu0 %v776
    %1059 = vmatpush1.msra.mxu0 %v775
    %1060 = vmatprep.subr.mxu0 %v784
    %1061 = vmatpush1.msra.mxu0 %v783
    %1062 = vmatprep.subr.mxu0 %v792
    %1063 = vmatpush1.msra.mxu0 %v791
    %1064 = vmatprep.subr.mxu0 %v800
    %1065 = vmatpush1.msra.mxu0 %v799
    %1066 = vmatprep.subr.mxu0 %v808
    %1067 = vmatpush1.msra.mxu0 %v807
    %1068 = vmatprep.subr.mxu0 %v816
    %1069 = vmatpush1.msra.mxu0 %v815
    %1070 = vmatprep.subr.mxu0 %v824
    %1071 = vmatpush1.msra.mxu0 %v823
    %1072 = vmatprep.subr.mxu0 %v832
    %1073 = vmatpush1.msra.mxu0 %v831
    %1074 = vmatprep.subr.mxu0 %v840
    %1075 = vmatpush1.msra.mxu0 %v839
    %1076 = vmatprep.subr.mxu0 %v848
    %1077 = vmatpush1.msra.mxu0 %v847
    %1078 = vmatprep.subr.mxu0 %v856
    %1079 = vmatpush1.msra.mxu0 %v855
    %1080 = vmatprep.subr.mxu0 %v864
    %1081 = vmatpush1.msra.mxu0 %v863
    %1082 = vmatprep.subr.mxu0 %v872
    %1083 = vmatpush1.msra.mxu0 %v871
    %1084 = vmatprep.subr.mxu0 %v880
    %1085 = vmatpush1.msra.mxu0 %v879
    %1086 = vmatprep.subr.mxu0 %v888
    %1087 = vmatpush1.msra.mxu0 %v887
    %1088 = vmatprep.subr.mxu0 %v896
    %1089 = vmatpush1.msra.mxu0 %v895
    %1090 = vmatprep.subr.mxu0 %v904
    %1091 = vmatpush1.msra.mxu0 %v903
    %1092 = vmatprep.subr.mxu0 %v912
    %1093 = vmatpush1.msra.mxu0 %v911
    %1094 = vmatprep.subr.mxu0 %v920
    %1095 = vmatpush1.msra.mxu0 %v919
    %1096 = vmatprep.subr.mxu0 %v928
    %1097 = vmatpush1.msra.mxu0 %v927
    %1098 = vmatprep.subr.mxu0 %v936
    %1099 = vmatpush1.msra.mxu0 %v935
    %1100 = vmatprep.subr.mxu0 %v944
    %1101 = vmatpush1.msra.mxu0 %v943
    %1102 = vmatprep.subr.mxu0 %v952
    %1103 = vmatpush1.msra.mxu0 %v951
    %1104 = vmatprep.subr.mxu0 %v960
    %1105 = vmatpush1.msra.mxu0 %v959
    %1106 = vmatprep.subr.mxu0 %v968
    %1107 = vmatpush1.msra.mxu0 %v967
    %1108 = vmatprep.mubr.f32.mxu0 %v588
    %1109 = vmatmul.mubr.f32.gmra.mrb[0].mxu0 %v587
    %v1110 = vpop.f32.mrb[0].mxu0
    %v1111 = vadd.f32 0.0, %v1110
    %v1112 = vpop.f32.mrb[0].mxu0
    %v1113 = vadd.f32 0.0, %v1112
    %1114 = vdwg.mxu0
    %1115 = vmatprep.subr.mxu0 %v722
    %1116 = vmatpush1.msra.mxu0 %v721
    %1117 = vmatprep.subr.mxu0 %v730
    %1118 = vmatpush1.msra.mxu0 %v729
    %1119 = vmatprep.subr.mxu0 %v738
    %1120 = vmatpush1.msra.mxu0 %v737
    %1121 = vmatprep.subr.mxu0 %v746
    %1122 = vmatpush1.msra.mxu0 %v745
    %1123 = vmatprep.subr.mxu0 %v754
    %1124 = vmatpush1.msra.mxu0 %v753
    %1125 = vmatprep.subr.mxu0 %v762
    %1126 = vmatpush1.msra.mxu0 %v761
    %1127 = vmatprep.subr.mxu0 %v770
    %1128 = vmatpush1.msra.mxu0 %v769
    %1129 = vmatprep.subr.mxu0 %v778
    %1130 = vmatpush1.msra.mxu0 %v777
    %1131 = vmatprep.subr.mxu0 %v786
    %1132 = vmatpush1.msra.mxu0 %v785
    %1133 = vmatprep.subr.mxu0 %v794
    %1134 = vmatpush1.msra.mxu0 %v793
    %1135 = vmatprep.subr.mxu0 %v802
    %1136 = vmatpush1.msra.mxu0 %v801
    %1137 = vmatprep.subr.mxu0 %v810
    %1138 = vmatpush1.msra.mxu0 %v809
    %1139 = vmatprep.subr.mxu0 %v818
    %1140 = vmatpush1.msra.mxu0 %v817
    %1141 = vmatprep.subr.mxu0 %v826
    %1142 = vmatpush1.msra.mxu0 %v825
    %1143 = vmatprep.subr.mxu0 %v834
    %1144 = vmatpush1.msra.mxu0 %v833
    %1145 = vmatprep.subr.mxu0 %v842
    %1146 = vmatpush1.msra.mxu0 %v841
    %1147 = vmatprep.subr.mxu0 %v850
    %1148 = vmatpush1.msra.mxu0 %v849
    %1149 = vmatprep.subr.mxu0 %v858
    %1150 = vmatpush1.msra.mxu0 %v857
    %1151 = vmatprep.subr.mxu0 %v866
    %1152 = vmatpush1.msra.mxu0 %v865
    %1153 = vmatprep.subr.mxu0 %v874
    %1154 = vmatpush1.msra.mxu0 %v873
    %1155 = vmatprep.subr.mxu0 %v882
    %1156 = vmatpush1.msra.mxu0 %v881
    %1157 = vmatprep.subr.mxu0 %v890
    %1158 = vmatpush1.msra.mxu0 %v889
    %1159 = vmatprep.subr.mxu0 %v898
    %1160 = vmatpush1.msra.mxu0 %v897
    %1161 = vmatprep.subr.mxu0 %v906
    %1162 = vmatpush1.msra.mxu0 %v905
    %1163 = vmatprep.subr.mxu0 %v914
    %1164 = vmatpush1.msra.mxu0 %v913
    %1165 = vmatprep.subr.mxu0 %v922
    %1166 = vmatpush1.msra.mxu0 %v921
    %1167 = vmatprep.subr.mxu0 %v930
    %1168 = vmatpush1.msra.mxu0 %v929
    %1169 = vmatprep.subr.mxu0 %v938
    %1170 = vmatpush1.msra.mxu0 %v937
    %1171 = vmatprep.subr.mxu0 %v946
    %1172 = vmatpush1.msra.mxu0 %v945
    %1173 = vmatprep.subr.mxu0 %v954
    %1174 = vmatpush1.msra.mxu0 %v953
    %1175 = vmatprep.subr.mxu0 %v962
    %1176 = vmatpush1.msra.mxu0 %v961
    %1177 = vmatprep.subr.mxu0 %v970
    %1178 = vmatpush1.msra.mxu0 %v969
    %1179 = vmatprep.mubr.f32.mxu0 %v588
    %1180 = vmatmul.mubr.f32.gmra.mrb[0].mxu0 %v587
    %v1181 = vpop.f32.mrb[0].mxu0
    %v1182 = vadd.f32 0.0, %v1181
    %v1183 = vpop.f32.mrb[0].mxu0
    %v1184 = vadd.f32 0.0, %v1183
    %1185 = vdwg.mxu0
    %1186 = vmatprep.subr.mxu0 %v724
    %1187 = vmatpush1.msra.mxu0 %v723
    %1188 = vmatprep.subr.mxu0 %v732
    %1189 = vmatpush1.msra.mxu0 %v731
    %1190 = vmatprep.subr.mxu0 %v740
    %1191 = vmatpush1.msra.mxu0 %v739
    %1192 = vmatprep.subr.mxu0 %v748
    %1193 = vmatpush1.msra.mxu0 %v747
    %1194 = vmatprep.subr.mxu0 %v756
    %1195 = vmatpush1.msra.mxu0 %v755
    %1196 = vmatprep.subr.mxu0 %v764
    %1197 = vmatpush1.msra.mxu0 %v763
    %1198 = vmatprep.subr.mxu0 %v772
    %1199 = vmatpush1.msra.mxu0 %v771
    %1200 = vmatprep.subr.mxu0 %v780
    %1201 = vmatpush1.msra.mxu0 %v779
    %1202 = vmatprep.subr.mxu0 %v788
    %1203 = vmatpush1.msra.mxu0 %v787
    %1204 = vmatprep.subr.mxu0 %v796
    %1205 = vmatpush1.msra.mxu0 %v795
    %1206 = vmatprep.subr.mxu0 %v804
    %1207 = vmatpush1.msra.mxu0 %v803
    %1208 = vmatprep.subr.mxu0 %v812
    %1209 = vmatpush1.msra.mxu0 %v811
    %1210 = vmatprep.subr.mxu0 %v820
    %1211 = vmatpush1.msra.mxu0 %v819
    %1212 = vmatprep.subr.mxu0 %v828
    %1213 = vmatpush1.msra.mxu0 %v827
    %1214 = vmatprep.subr.mxu0 %v836
    %1215 = vmatpush1.msra.mxu0 %v835
    %1216 = vmatprep.subr.mxu0 %v844
    %1217 = vmatpush1.msra.mxu0 %v843
    %1218 = vmatprep.subr.mxu0 %v852
    %1219 = vmatpush1.msra.mxu0 %v851
    %1220 = vmatprep.subr.mxu0 %v860
    %1221 = vmatpush1.msra.mxu0 %v859
    %1222 = vmatprep.subr.mxu0 %v868
    %1223 = vmatpush1.msra.mxu0 %v867
    %1224 = vmatprep.subr.mxu0 %v876
    %1225 = vmatpush1.msra.mxu0 %v875
    %1226 = vmatprep.subr.mxu0 %v884
    %1227 = vmatpush1.msra.mxu0 %v883
    %1228 = vmatprep.subr.mxu0 %v892
    %1229 = vmatpush1.msra.mxu0 %v891
    %1230 = vmatprep.subr.mxu0 %v900
    %1231 = vmatpush1.msra.mxu0 %v899
    %1232 = vmatprep.subr.mxu0 %v908
    %1233 = vmatpush1.msra.mxu0 %v907
    %1234 = vmatprep.subr.mxu0 %v916
    %1235 = vmatpush1.msra.mxu0 %v915
    %1236 = vmatprep.subr.mxu0 %v924
    %1237 = vmatpush1.msra.mxu0 %v923
    %1238 = vmatprep.subr.mxu0 %v932
    %1239 = vmatpush1.msra.mxu0 %v931
    %1240 = vmatprep.subr.mxu0 %v940
    %1241 = vmatpush1.msra.mxu0 %v939
    %1242 = vmatprep.subr.mxu0 %v948
    %1243 = vmatpush1.msra.mxu0 %v947
    %1244 = vmatprep.subr.mxu0 %v956
    %1245 = vmatpush1.msra.mxu0 %v955
    %1246 = vmatprep.subr.mxu0 %v964
    %1247 = vmatpush1.msra.mxu0 %v963
    %1248 = vmatprep.subr.mxu0 %v972
    %1249 = vmatpush1.msra.mxu0 %v971
    %1250 = vmatprep.mubr.f32.mxu0 %v588
    %1251 = vmatmul.mubr.f32.gmra.mrb[0].mxu0 %v587
    %v1252 = vpop.f32.mrb[0].mxu0
    %v1253 = vadd.f32 0.0, %v1252
    %v1254 = vpop.f32.mrb[0].mxu0
    %v1255 = vadd.f32 0.0, %v1254
    %1256 = vdwg.mxu0
    %v1257 = vmax.f32 %v1040, 0.0
    %v1258 = vmax.f32 %v1042, 0.0
    %v1259 = vmax.f32 %v1111, 0.0
    %v1260 = vmax.f32 %v1113, 0.0
    %v1261 = vmax.f32 %v1182, 0.0
    %v1262 = vmax.f32 %v1184, 0.0
    %v1263 = vmax.f32 %v1253, 0.0
    %v1264 = vmax.f32 %v1255, 0.0
    %v1265 = vld [vmem:[%s4] sm:$0xf]
    %v1266 = vld [vmem:[%s4 + $0x4] sm:$0xf]
    %v1267 = vld [vmem:[%s4 + $0x8] sm:$0xf]
    %v1268 = vld [vmem:[%s4 + $0xc] sm:$0xf]
    %v1269 = vld [vmem:[%s4 + $0x10] sm:$0xf]
    %v1270 = vld [vmem:[%s4 + $0x14] sm:$0xf]
    %v1271 = vld [vmem:[%s4 + $0x18] sm:$0xf]
    %v1272 = vld [vmem:[%s4 + $0x1c] sm:$0xf]
    %v1273 = vld [vmem:[%s4 + $0x20] sm:$0xf]
    %v1274 = vld [vmem:[%s4 + $0x24] sm:$0xf]
    %v1275 = vld [vmem:[%s4 + $0x28] sm:$0xf]
    %v1276 = vld [vmem:[%s4 + $0x2c] sm:$0xf]
    %v1277 = vld [vmem:[%s4 + $0x30] sm:$0xf]
    %v1278 = vld [vmem:[%s4 + $0x34] sm:$0xf]
    %v1279 = vld [vmem:[%s4 + $0x38] sm:$0xf]
    %v1280 = vld [vmem:[%s4 + $0x3c] sm:$0xf]
    %v1281 = vld [vmem:[%s4 + $0x40] sm:$0xf]
    %v1282 = vld [vmem:[%s4 + $0x44] sm:$0xf]
    %v1283 = vld [vmem:[%s4 + $0x48] sm:$0xf]
    %v1284 = vld [vmem:[%s4 + $0x4c] sm:$0xf]
    %v1285 = vld [vmem:[%s4 + $0x50] sm:$0xf]
    %v1286 = vld [vmem:[%s4 + $0x54] sm:$0xf]
    %v1287 = vld [vmem:[%s4 + $0x58] sm:$0xf]
    %v1288 = vld [vmem:[%s4 + $0x5c] sm:$0xf]
    %v1289 = vld [vmem:[%s4 + $0x60] sm:$0xf]
    %v1290 = vld [vmem:[%s4 + $0x64] sm:$0xf]
    %v1291 = vld [vmem:[%s4 + $0x68] sm:$0xf]
    %v1292 = vld [vmem:[%s4 + $0x6c] sm:$0xf]
    %v1293 = vld [vmem:[%s4 + $0x70] sm:$0xf]
    %v1294 = vld [vmem:[%s4 + $0x74] sm:$0xf]
    %v1295 = vld [vmem:[%s4 + $0x78] sm:$0xf]
    %v1296 = vld [vmem:[%s4 + $0x7c] sm:$0xf]
    %v1297 = vld [vmem:[%s4 + $0x80] sm:$0xf]
    %v1298 = vld [vmem:[%s4 + $0x84] sm:$0xf]
    %v1299 = vld [vmem:[%s4 + $0x88] sm:$0xf]
    %v1300 = vld [vmem:[%s4 + $0x8c] sm:$0xf]
    %v1301 = vld [vmem:[%s4 + $0x90] sm:$0xf]
    %v1302 = vld [vmem:[%s4 + $0x94] sm:$0xf]
    %v1303 = vld [vmem:[%s4 + $0x98] sm:$0xf]
    %v1304 = vld [vmem:[%s4 + $0x9c] sm:$0xf]
    %v1305 = vld [vmem:[%s4 + $0xa0] sm:$0xf]
    %v1306 = vld [vmem:[%s4 + $0xa4] sm:$0xf]
    %v1307 = vld [vmem:[%s4 + $0xa8] sm:$0xf]
    %v1308 = vld [vmem:[%s4 + $0xac] sm:$0xf]
    %v1309 = vld [vmem:[%s4 + $0xb0] sm:$0xf]
    %v1310 = vld [vmem:[%s4 + $0xb4] sm:$0xf]
    %v1311 = vld [vmem:[%s4 + $0xb8] sm:$0xf]
    %v1312 = vld [vmem:[%s4 + $0xbc] sm:$0xf]
    %v1313 = vld [vmem:[%s4 + $0xc0] sm:$0xf]
    %v1314 = vld [vmem:[%s4 + $0xc4] sm:$0xf]
    %v1315 = vld [vmem:[%s4 + $0xc8] sm:$0xf]
    %v1316 = vld [vmem:[%s4 + $0xcc] sm:$0xf]
    %v1317 = vld [vmem:[%s4 + $0xd0] sm:$0xf]
    %v1318 = vld [vmem:[%s4 + $0xd4] sm:$0xf]
    %v1319 = vld [vmem:[%s4 + $0xd8] sm:$0xf]
    %v1320 = vld [vmem:[%s4 + $0xdc] sm:$0xf]
    %v1321 = vld [vmem:[%s4 + $0xe0] sm:$0xf]
    %v1322 = vld [vmem:[%s4 + $0xe4] sm:$0xf]
    %v1323 = vld [vmem:[%s4 + $0xe8] sm:$0xf]
    %v1324 = vld [vmem:[%s4 + $0xec] sm:$0xf]
    %v1325 = vld [vmem:[%s4 + $0xf0] sm:$0xf]
    %v1326 = vld [vmem:[%s4 + $0xf4] sm:$0xf]
    %v1327 = vld [vmem:[%s4 + $0xf8] sm:$0xf]
    %v1328 = vld [vmem:[%s4 + $0xfc] sm:$0xf]
    %v1329 = vld [vmem:[%s4 + $0x100] sm:$0xf]
    %v1330 = vld [vmem:[%s4 + $0x104] sm:$0xf]
    %v1331 = vld [vmem:[%s4 + $0x108] sm:$0xf]
    %v1332 = vld [vmem:[%s4 + $0x10c] sm:$0xf]
    %v1333 = vld [vmem:[%s4 + $0x110] sm:$0xf]
    %v1334 = vld [vmem:[%s4 + $0x114] sm:$0xf]
    %v1335 = vld [vmem:[%s4 + $0x118] sm:$0xf]
    %v1336 = vld [vmem:[%s4 + $0x11c] sm:$0xf]
    %v1337 = vld [vmem:[%s4 + $0x120] sm:$0xf]
    %v1338 = vld [vmem:[%s4 + $0x124] sm:$0xf]
    %v1339 = vld [vmem:[%s4 + $0x128] sm:$0xf]
    %v1340 = vld [vmem:[%s4 + $0x12c] sm:$0xf]
    %v1341 = vld [vmem:[%s4 + $0x130] sm:$0xf]
    %v1342 = vld [vmem:[%s4 + $0x134] sm:$0xf]
    %v1343 = vld [vmem:[%s4 + $0x138] sm:$0xf]
    %v1344 = vld [vmem:[%s4 + $0x13c] sm:$0xf]
    %v1345 = vld [vmem:[%s4 + $0x140] sm:$0xf]
    %v1346 = vld [vmem:[%s4 + $0x144] sm:$0xf]
    %v1347 = vld [vmem:[%s4 + $0x148] sm:$0xf]
    %v1348 = vld [vmem:[%s4 + $0x14c] sm:$0xf]
    %v1349 = vld [vmem:[%s4 + $0x150] sm:$0xf]
    %v1350 = vld [vmem:[%s4 + $0x154] sm:$0xf]
    %v1351 = vld [vmem:[%s4 + $0x158] sm:$0xf]
    %v1352 = vld [vmem:[%s4 + $0x15c] sm:$0xf]
    %v1353 = vld [vmem:[%s4 + $0x160] sm:$0xf]
    %v1354 = vld [vmem:[%s4 + $0x164] sm:$0xf]
    %v1355 = vld [vmem:[%s4 + $0x168] sm:$0xf]
    %v1356 = vld [vmem:[%s4 + $0x16c] sm:$0xf]
    %v1357 = vld [vmem:[%s4 + $0x170] sm:$0xf]
    %v1358 = vld [vmem:[%s4 + $0x174] sm:$0xf]
    %v1359 = vld [vmem:[%s4 + $0x178] sm:$0xf]
    %v1360 = vld [vmem:[%s4 + $0x17c] sm:$0xf]
    %v1361 = vld [vmem:[%s4 + $0x180] sm:$0xf]
    %v1362 = vld [vmem:[%s4 + $0x184] sm:$0xf]
    %v1363 = vld [vmem:[%s4 + $0x188] sm:$0xf]
    %v1364 = vld [vmem:[%s4 + $0x18c] sm:$0xf]
    %v1365 = vld [vmem:[%s4 + $0x190] sm:$0xf]
    %v1366 = vld [vmem:[%s4 + $0x194] sm:$0xf]
    %v1367 = vld [vmem:[%s4 + $0x198] sm:$0xf]
    %v1368 = vld [vmem:[%s4 + $0x19c] sm:$0xf]
    %v1369 = vld [vmem:[%s4 + $0x1a0] sm:$0xf]
    %v1370 = vld [vmem:[%s4 + $0x1a4] sm:$0xf]
    %v1371 = vld [vmem:[%s4 + $0x1a8] sm:$0xf]
    %v1372 = vld [vmem:[%s4 + $0x1ac] sm:$0xf]
    %v1373 = vld [vmem:[%s4 + $0x1b0] sm:$0xf]
    %v1374 = vld [vmem:[%s4 + $0x1b4] sm:$0xf]
    %v1375 = vld [vmem:[%s4 + $0x1b8] sm:$0xf]
    %v1376 = vld [vmem:[%s4 + $0x1bc] sm:$0xf]
    %v1377 = vld [vmem:[%s4 + $0x1c0] sm:$0xf]
    %v1378 = vld [vmem:[%s4 + $0x1c4] sm:$0xf]
    %v1379 = vld [vmem:[%s4 + $0x1c8] sm:$0xf]
    %v1380 = vld [vmem:[%s4 + $0x1cc] sm:$0xf]
    %v1381 = vld [vmem:[%s4 + $0x1d0] sm:$0xf]
    %v1382 = vld [vmem:[%s4 + $0x1d4] sm:$0xf]
    %v1383 = vld [vmem:[%s4 + $0x1d8] sm:$0xf]
    %v1384 = vld [vmem:[%s4 + $0x1dc] sm:$0xf]
    %v1385 = vld [vmem:[%s4 + $0x1e0] sm:$0xf]
    %v1386 = vld [vmem:[%s4 + $0x1e4] sm:$0xf]
    %v1387 = vld [vmem:[%s4 + $0x1e8] sm:$0xf]
    %v1388 = vld [vmem:[%s4 + $0x1ec] sm:$0xf]
    %v1389 = vld [vmem:[%s4 + $0x1f0] sm:$0xf]
    %v1390 = vld [vmem:[%s4 + $0x1f4] sm:$0xf]
    %v1391 = vld [vmem:[%s4 + $0x1f8] sm:$0xf]
    %v1392 = vld [vmem:[%s4 + $0x1fc] sm:$0xf]
    %v1393 = vunpack.c.l.bf16 %v1265
    %v1394 = vunpack.c.l.bf16 %v1266
    %v1395 = vunpack.c.l.bf16 %v1267
    %v1396 = vunpack.c.l.bf16 %v1268
    %v1397 = vunpack.c.l.bf16 %v1269
    %v1398 = vunpack.c.l.bf16 %v1270
    %v1399 = vunpack.c.l.bf16 %v1271
    %v1400 = vunpack.c.l.bf16 %v1272
    %v1401 = vunpack.c.l.bf16 %v1273
    %v1402 = vunpack.c.l.bf16 %v1274
    %v1403 = vunpack.c.l.bf16 %v1275
    %v1404 = vunpack.c.l.bf16 %v1276
    %v1405 = vunpack.c.l.bf16 %v1277
    %v1406 = vunpack.c.l.bf16 %v1278
    %v1407 = vunpack.c.l.bf16 %v1279
    %v1408 = vunpack.c.l.bf16 %v1280
    %v1409 = vunpack.c.l.bf16 %v1281
    %v1410 = vunpack.c.l.bf16 %v1282
    %v1411 = vunpack.c.l.bf16 %v1283
    %v1412 = vunpack.c.l.bf16 %v1284
    %v1413 = vunpack.c.l.bf16 %v1285
    %v1414 = vunpack.c.l.bf16 %v1286
    %v1415 = vunpack.c.l.bf16 %v1287
    %v1416 = vunpack.c.l.bf16 %v1288
    %v1417 = vunpack.c.l.bf16 %v1289
    %v1418 = vunpack.c.l.bf16 %v1290
    %v1419 = vunpack.c.l.bf16 %v1291
    %v1420 = vunpack.c.l.bf16 %v1292
    %v1421 = vunpack.c.l.bf16 %v1293
    %v1422 = vunpack.c.l.bf16 %v1294
    %v1423 = vunpack.c.l.bf16 %v1295
    %v1424 = vunpack.c.l.bf16 %v1296
    %v1425 = vunpack.c.l.bf16 %v1297
    %v1426 = vunpack.c.l.bf16 %v1298
    %v1427 = vunpack.c.l.bf16 %v1299
    %v1428 = vunpack.c.l.bf16 %v1300
    %v1429 = vunpack.c.l.bf16 %v1301
    %v1430 = vunpack.c.l.bf16 %v1302
    %v1431 = vunpack.c.l.bf16 %v1303
    %v1432 = vunpack.c.l.bf16 %v1304
    %v1433 = vunpack.c.l.bf16 %v1305
    %v1434 = vunpack.c.l.bf16 %v1306
    %v1435 = vunpack.c.l.bf16 %v1307
    %v1436 = vunpack.c.l.bf16 %v1308
    %v1437 = vunpack.c.l.bf16 %v1309
    %v1438 = vunpack.c.l.bf16 %v1310
    %v1439 = vunpack.c.l.bf16 %v1311
    %v1440 = vunpack.c.l.bf16 %v1312
    %v1441 = vunpack.c.l.bf16 %v1313
    %v1442 = vunpack.c.l.bf16 %v1314
    %v1443 = vunpack.c.l.bf16 %v1315
    %v1444 = vunpack.c.l.bf16 %v1316
    %v1445 = vunpack.c.l.bf16 %v1317
    %v1446 = vunpack.c.l.bf16 %v1318
    %v1447 = vunpack.c.l.bf16 %v1319
    %v1448 = vunpack.c.l.bf16 %v1320
    %v1449 = vunpack.c.l.bf16 %v1321
    %v1450 = vunpack.c.l.bf16 %v1322
    %v1451 = vunpack.c.l.bf16 %v1323
    %v1452 = vunpack.c.l.bf16 %v1324
    %v1453 = vunpack.c.l.bf16 %v1325
    %v1454 = vunpack.c.l.bf16 %v1326
    %v1455 = vunpack.c.l.bf16 %v1327
    %v1456 = vunpack.c.l.bf16 %v1328
    %v1457 = vunpack.c.l.bf16 %v1329
    %v1458 = vunpack.c.l.bf16 %v1330
    %v1459 = vunpack.c.l.bf16 %v1331
    %v1460 = vunpack.c.l.bf16 %v1332
    %v1461 = vunpack.c.l.bf16 %v1333
    %v1462 = vunpack.c.l.bf16 %v1334
    %v1463 = vunpack.c.l.bf16 %v1335
    %v1464 = vunpack.c.l.bf16 %v1336
    %v1465 = vunpack.c.l.bf16 %v1337
    %v1466 = vunpack.c.l.bf16 %v1338
    %v1467 = vunpack.c.l.bf16 %v1339
    %v1468 = vunpack.c.l.bf16 %v1340
    %v1469 = vunpack.c.l.bf16 %v1341
    %v1470 = vunpack.c.l.bf16 %v1342
    %v1471 = vunpack.c.l.bf16 %v1343
    %v1472 = vunpack.c.l.bf16 %v1344
    %v1473 = vunpack.c.l.bf16 %v1345
    %v1474 = vunpack.c.l.bf16 %v1346
    %v1475 = vunpack.c.l.bf16 %v1347
    %v1476 = vunpack.c.l.bf16 %v1348
    %v1477 = vunpack.c.l.bf16 %v1349
    %v1478 = vunpack.c.l.bf16 %v1350
    %v1479 = vunpack.c.l.bf16 %v1351
    %v1480 = vunpack.c.l.bf16 %v1352
    %v1481 = vunpack.c.l.bf16 %v1353
    %v1482 = vunpack.c.l.bf16 %v1354
    %v1483 = vunpack.c.l.bf16 %v1355
    %v1484 = vunpack.c.l.bf16 %v1356
    %v1485 = vunpack.c.l.bf16 %v1357
    %v1486 = vunpack.c.l.bf16 %v1358
    %v1487 = vunpack.c.l.bf16 %v1359
    %v1488 = vunpack.c.l.bf16 %v1360
    %v1489 = vunpack.c.l.bf16 %v1361
    %v1490 = vunpack.c.l.bf16 %v1362
    %v1491 = vunpack.c.l.bf16 %v1363
    %v1492 = vunpack.c.l.bf16 %v1364
    %v1493 = vunpack.c.l.bf16 %v1365
    %v1494 = vunpack.c.l.bf16 %v1366
    %v1495 = vunpack.c.l.bf16 %v1367
    %v1496 = vunpack.c.l.bf16 %v1368
    %v1497 = vunpack.c.l.bf16 %v1369
    %v1498 = vunpack.c.l.bf16 %v1370
    %v1499 = vunpack.c.l.bf16 %v1371
    %v1500 = vunpack.c.l.bf16 %v1372
    %v1501 = vunpack.c.l.bf16 %v1373
    %v1502 = vunpack.c.l.bf16 %v1374
    %v1503 = vunpack.c.l.bf16 %v1375
    %v1504 = vunpack.c.l.bf16 %v1376
    %v1505 = vunpack.c.l.bf16 %v1377
    %v1506 = vunpack.c.l.bf16 %v1378
    %v1507 = vunpack.c.l.bf16 %v1379
    %v1508 = vunpack.c.l.bf16 %v1380
    %v1509 = vunpack.c.l.bf16 %v1381
    %v1510 = vunpack.c.l.bf16 %v1382
    %v1511 = vunpack.c.l.bf16 %v1383
    %v1512 = vunpack.c.l.bf16 %v1384
    %v1513 = vunpack.c.l.bf16 %v1385
    %v1514 = vunpack.c.l.bf16 %v1386
    %v1515 = vunpack.c.l.bf16 %v1387
    %v1516 = vunpack.c.l.bf16 %v1388
    %v1517 = vunpack.c.l.bf16 %v1389
    %v1518 = vunpack.c.l.bf16 %v1390
    %v1519 = vunpack.c.l.bf16 %v1391
    %v1520 = vunpack.c.l.bf16 %v1392
    %1521 = vmatprep.subr.mxu0 0.0
    %1522 = vmatpush1.msra.mxu0 %v1393
    %1523 = vmatprep.subr.mxu0 0.0
    %1524 = vmatpush1.msra.mxu0 %v1394
    %1525 = vmatprep.subr.mxu0 0.0
    %1526 = vmatpush1.msra.mxu0 %v1395
    %1527 = vmatprep.subr.mxu0 0.0
    %1528 = vmatpush1.msra.mxu0 %v1396
    %1529 = vmatprep.subr.mxu0 0.0
    %1530 = vmatpush1.msra.mxu0 %v1397
    %1531 = vmatprep.subr.mxu0 0.0
    %1532 = vmatpush1.msra.mxu0 %v1398
    %1533 = vmatprep.subr.mxu0 0.0
    %1534 = vmatpush1.msra.mxu0 %v1399
    %1535 = vmatprep.subr.mxu0 0.0
    %1536 = vmatpush1.msra.mxu0 %v1400
    %1537 = vmatprep.subr.mxu0 0.0
    %1538 = vmatpush1.msra.mxu0 %v1401
    %1539 = vmatprep.subr.mxu0 0.0
    %1540 = vmatpush1.msra.mxu0 %v1402
    %1541 = vmatprep.subr.mxu0 0.0
    %1542 = vmatpush1.msra.mxu0 %v1403
    %1543 = vmatprep.subr.mxu0 0.0
    %1544 = vmatpush1.msra.mxu0 %v1404
    %1545 = vmatprep.subr.mxu0 0.0
    %1546 = vmatpush1.msra.mxu0 %v1405
    %1547 = vmatprep.subr.mxu0 0.0
    %1548 = vmatpush1.msra.mxu0 %v1406
    %1549 = vmatprep.subr.mxu0 0.0
    %1550 = vmatpush1.msra.mxu0 %v1407
    %1551 = vmatprep.subr.mxu0 0.0
    %1552 = vmatpush1.msra.mxu0 %v1408
    %1553 = vmatprep.subr.mxu0 0.0
    %1554 = vmatpush1.msra.mxu0 %v1409
    %1555 = vmatprep.subr.mxu0 0.0
    %1556 = vmatpush1.msra.mxu0 %v1410
    %1557 = vmatprep.subr.mxu0 0.0
    %1558 = vmatpush1.msra.mxu0 %v1411
    %1559 = vmatprep.subr.mxu0 0.0
    %1560 = vmatpush1.msra.mxu0 %v1412
    %1561 = vmatprep.subr.mxu0 0.0
    %1562 = vmatpush1.msra.mxu0 %v1413
    %1563 = vmatprep.subr.mxu0 0.0
    %1564 = vmatpush1.msra.mxu0 %v1414
    %1565 = vmatprep.subr.mxu0 0.0
    %1566 = vmatpush1.msra.mxu0 %v1415
    %1567 = vmatprep.subr.mxu0 0.0
    %1568 = vmatpush1.msra.mxu0 %v1416
    %1569 = vmatprep.subr.mxu0 0.0
    %1570 = vmatpush1.msra.mxu0 %v1417
    %1571 = vmatprep.subr.mxu0 0.0
    %1572 = vmatpush1.msra.mxu0 %v1418
    %1573 = vmatprep.subr.mxu0 0.0
    %1574 = vmatpush1.msra.mxu0 %v1419
    %1575 = vmatprep.subr.mxu0 0.0
    %1576 = vmatpush1.msra.mxu0 %v1420
    %1577 = vmatprep.subr.mxu0 0.0
    %1578 = vmatpush1.msra.mxu0 %v1421
    %1579 = vmatprep.subr.mxu0 0.0
    %1580 = vmatpush1.msra.mxu0 %v1422
    %1581 = vmatprep.subr.mxu0 0.0
    %1582 = vmatpush1.msra.mxu0 %v1423
    %1583 = vmatprep.subr.mxu0 0.0
    %1584 = vmatpush1.msra.mxu0 %v1424
    %1585 = vmatprep.mubr.f32.mxu0 %v1258
    %1586 = vmatmul.mubr.f32.gmra.mrb[0].mxu0 %v1257
    %v1587 = vpop.f32.mrb[0].mxu0
    %v1588 = vadd.f32 0.0, %v1587
    %v1589 = vpop.f32.mrb[0].mxu0
    %1590 = vdwg.mxu0
    %1591 = vmatprep.subr.mxu0 0.0
    %1592 = vmatpush1.msra.mxu0 %v1425
    %1593 = vmatprep.subr.mxu0 0.0
    %1594 = vmatpush1.msra.mxu0 %v1426
    %1595 = vmatprep.subr.mxu0 0.0
    %1596 = vmatpush1.msra.mxu0 %v1427
    %1597 = vmatprep.subr.mxu0 0.0
    %1598 = vmatpush1.msra.mxu0 %v1428
    %1599 = vmatprep.subr.mxu0 0.0
    %1600 = vmatpush1.msra.mxu0 %v1429
    %1601 = vmatprep.subr.mxu0 0.0
    %1602 = vmatpush1.msra.mxu0 %v1430
    %1603 = vmatprep.subr.mxu0 0.0
    %1604 = vmatpush1.msra.mxu0 %v1431
    %1605 = vmatprep.subr.mxu0 0.0
    %1606 = vmatpush1.msra.mxu0 %v1432
    %1607 = vmatprep.subr.mxu0 0.0
    %1608 = vmatpush1.msra.mxu0 %v1433
    %1609 = vmatprep.subr.mxu0 0.0
    %1610 = vmatpush1.msra.mxu0 %v1434
    %1611 = vmatprep.subr.mxu0 0.0
    %1612 = vmatpush1.msra.mxu0 %v1435
    %1613 = vmatprep.subr.mxu0 0.0
    %1614 = vmatpush1.msra.mxu0 %v1436
    %1615 = vmatprep.subr.mxu0 0.0
    %1616 = vmatpush1.msra.mxu0 %v1437
    %1617 = vmatprep.subr.mxu0 0.0
    %1618 = vmatpush1.msra.mxu0 %v1438
    %1619 = vmatprep.subr.mxu0 0.0
    %1620 = vmatpush1.msra.mxu0 %v1439
    %1621 = vmatprep.subr.mxu0 0.0
    %1622 = vmatpush1.msra.mxu0 %v1440
    %1623 = vmatprep.subr.mxu0 0.0
    %1624 = vmatpush1.msra.mxu0 %v1441
    %1625 = vmatprep.subr.mxu0 0.0
    %1626 = vmatpush1.msra.mxu0 %v1442
    %1627 = vmatprep.subr.mxu0 0.0
    %1628 = vmatpush1.msra.mxu0 %v1443
    %1629 = vmatprep.subr.mxu0 0.0
    %1630 = vmatpush1.msra.mxu0 %v1444
    %1631 = vmatprep.subr.mxu0 0.0
    %1632 = vmatpush1.msra.mxu0 %v1445
    %1633 = vmatprep.subr.mxu0 0.0
    %1634 = vmatpush1.msra.mxu0 %v1446
    %1635 = vmatprep.subr.mxu0 0.0
    %1636 = vmatpush1.msra.mxu0 %v1447
    %1637 = vmatprep.subr.mxu0 0.0
    %1638 = vmatpush1.msra.mxu0 %v1448
    %1639 = vmatprep.subr.mxu0 0.0
    %1640 = vmatpush1.msra.mxu0 %v1449
    %1641 = vmatprep.subr.mxu0 0.0
    %1642 = vmatpush1.msra.mxu0 %v1450
    %1643 = vmatprep.subr.mxu0 0.0
    %1644 = vmatpush1.msra.mxu0 %v1451
    %1645 = vmatprep.subr.mxu0 0.0
    %1646 = vmatpush1.msra.mxu0 %v1452
    %1647 = vmatprep.subr.mxu0 0.0
    %1648 = vmatpush1.msra.mxu0 %v1453
    %1649 = vmatprep.subr.mxu0 0.0
    %1650 = vmatpush1.msra.mxu0 %v1454
    %1651 = vmatprep.subr.mxu0 0.0
    %1652 = vmatpush1.msra.mxu0 %v1455
    %1653 = vmatprep.subr.mxu0 0.0
    %1654 = vmatpush1.msra.mxu0 %v1456
    %1655 = vmatprep.mubr.f32.mxu0 %v1260
    %1656 = vmatmul.mubr.f32.gmra.mrb[0].mxu0 %v1259
    %v1657 = vpop.f32.mrb[0].mxu0
    %v1658 = vadd.f32 %v1588, %v1657
    %v1659 = vpop.f32.mrb[0].mxu0
    %1660 = vdwg.mxu0
    %1661 = vmatprep.subr.mxu0 0.0
    %1662 = vmatpush1.msra.mxu0 %v1457
    %1663 = vmatprep.subr.mxu0 0.0
    %1664 = vmatpush1.msra.mxu0 %v1458
    %1665 = vmatprep.subr.mxu0 0.0
    %1666 = vmatpush1.msra.mxu0 %v1459
    %1667 = vmatprep.subr.mxu0 0.0
    %1668 = vmatpush1.msra.mxu0 %v1460
    %1669 = vmatprep.subr.mxu0 0.0
    %1670 = vmatpush1.msra.mxu0 %v1461
    %1671 = vmatprep.subr.mxu0 0.0
    %1672 = vmatpush1.msra.mxu0 %v1462
    %1673 = vmatprep.subr.mxu0 0.0
    %1674 = vmatpush1.msra.mxu0 %v1463
    %1675 = vmatprep.subr.mxu0 0.0
    %1676 = vmatpush1.msra.mxu0 %v1464
    %1677 = vmatprep.subr.mxu0 0.0
    %1678 = vmatpush1.msra.mxu0 %v1465
    %1679 = vmatprep.subr.mxu0 0.0
    %1680 = vmatpush1.msra.mxu0 %v1466
    %1681 = vmatprep.subr.mxu0 0.0
    %1682 = vmatpush1.msra.mxu0 %v1467
    %1683 = vmatprep.subr.mxu0 0.0
    %1684 = vmatpush1.msra.mxu0 %v1468
    %1685 = vmatprep.subr.mxu0 0.0
    %1686 = vmatpush1.msra.mxu0 %v1469
    %1687 = vmatprep.subr.mxu0 0.0
    %1688 = vmatpush1.msra.mxu0 %v1470
    %1689 = vmatprep.subr.mxu0 0.0
    %1690 = vmatpush1.msra.mxu0 %v1471
    %1691 = vmatprep.subr.mxu0 0.0
    %1692 = vmatpush1.msra.mxu0 %v1472
    %1693 = vmatprep.subr.mxu0 0.0
    %1694 = vmatpush1.msra.mxu0 %v1473
    %1695 = vmatprep.subr.mxu0 0.0
    %1696 = vmatpush1.msra.mxu0 %v1474
    %1697 = vmatprep.subr.mxu0 0.0
    %1698 = vmatpush1.msra.mxu0 %v1475
    %1699 = vmatprep.subr.mxu0 0.0
    %1700 = vmatpush1.msra.mxu0 %v1476
    %1701 = vmatprep.subr.mxu0 0.0
    %1702 = vmatpush1.msra.mxu0 %v1477
    %1703 = vmatprep.subr.mxu0 0.0
    %1704 = vmatpush1.msra.mxu0 %v1478
    %1705 = vmatprep.subr.mxu0 0.0
    %1706 = vmatpush1.msra.mxu0 %v1479
    %1707 = vmatprep.subr.mxu0 0.0
    %1708 = vmatpush1.msra.mxu0 %v1480
    %1709 = vmatprep.subr.mxu0 0.0
    %1710 = vmatpush1.msra.mxu0 %v1481
    %1711 = vmatprep.subr.mxu0 0.0
    %1712 = vmatpush1.msra.mxu0 %v1482
    %1713 = vmatprep.subr.mxu0 0.0
    %1714 = vmatpush1.msra.mxu0 %v1483
    %1715 = vmatprep.subr.mxu0 0.0
    %1716 = vmatpush1.msra.mxu0 %v1484
    %1717 = vmatprep.subr.mxu0 0.0
    %1718 = vmatpush1.msra.mxu0 %v1485
    %1719 = vmatprep.subr.mxu0 0.0
    %1720 = vmatpush1.msra.mxu0 %v1486
    %1721 = vmatprep.subr.mxu0 0.0
    %1722 = vmatpush1.msra.mxu0 %v1487
    %1723 = vmatprep.subr.mxu0 0.0
    %1724 = vmatpush1.msra.mxu0 %v1488
    %1725 = vmatprep.mubr.f32.mxu0 %v1262
    %1726 = vmatmul.mubr.f32.gmra.mrb[0].mxu0 %v1261
    %v1727 = vpop.f32.mrb[0].mxu0
    %v1728 = vadd.f32 %v1658, %v1727
    %v1729 = vpop.f32.mrb[0].mxu0
    %1730 = vdwg.mxu0
    %1731 = vmatprep.subr.mxu0 0.0
    %1732 = vmatpush1.msra.mxu0 %v1489
    %1733 = vmatprep.subr.mxu0 0.0
    %1734 = vmatpush1.msra.mxu0 %v1490
    %1735 = vmatprep.subr.mxu0 0.0
    %1736 = vmatpush1.msra.mxu0 %v1491
    %1737 = vmatprep.subr.mxu0 0.0
    %1738 = vmatpush1.msra.mxu0 %v1492
    %1739 = vmatprep.subr.mxu0 0.0
    %1740 = vmatpush1.msra.mxu0 %v1493
    %1741 = vmatprep.subr.mxu0 0.0
    %1742 = vmatpush1.msra.mxu0 %v1494
    %1743 = vmatprep.subr.mxu0 0.0
    %1744 = vmatpush1.msra.mxu0 %v1495
    %1745 = vmatprep.subr.mxu0 0.0
    %1746 = vmatpush1.msra.mxu0 %v1496
    %1747 = vmatprep.subr.mxu0 0.0
    %1748 = vmatpush1.msra.mxu0 %v1497
    %1749 = vmatprep.subr.mxu0 0.0
    %1750 = vmatpush1.msra.mxu0 %v1498
    %1751 = vmatprep.subr.mxu0 0.0
    %1752 = vmatpush1.msra.mxu0 %v1499
    %1753 = vmatprep.subr.mxu0 0.0
    %1754 = vmatpush1.msra.mxu0 %v1500
    %1755 = vmatprep.subr.mxu0 0.0
    %1756 = vmatpush1.msra.mxu0 %v1501
    %1757 = vmatprep.subr.mxu0 0.0
    %1758 = vmatpush1.msra.mxu0 %v1502
    %1759 = vmatprep.subr.mxu0 0.0
    %1760 = vmatpush1.msra.mxu0 %v1503
    %1761 = vmatprep.subr.mxu0 0.0
    %1762 = vmatpush1.msra.mxu0 %v1504
    %1763 = vmatprep.subr.mxu0 0.0
    %1764 = vmatpush1.msra.mxu0 %v1505
    %1765 = vmatprep.subr.mxu0 0.0
    %1766 = vmatpush1.msra.mxu0 %v1506
    %1767 = vmatprep.subr.mxu0 0.0
    %1768 = vmatpush1.msra.mxu0 %v1507
    %1769 = vmatprep.subr.mxu0 0.0
    %1770 = vmatpush1.msra.mxu0 %v1508
    %1771 = vmatprep.subr.mxu0 0.0
    %1772 = vmatpush1.msra.mxu0 %v1509
    %1773 = vmatprep.subr.mxu0 0.0
    %1774 = vmatpush1.msra.mxu0 %v1510
    %1775 = vmatprep.subr.mxu0 0.0
    %1776 = vmatpush1.msra.mxu0 %v1511
    %1777 = vmatprep.subr.mxu0 0.0
    %1778 = vmatpush1.msra.mxu0 %v1512
    %1779 = vmatprep.subr.mxu0 0.0
    %1780 = vmatpush1.msra.mxu0 %v1513
    %1781 = vmatprep.subr.mxu0 0.0
    %1782 = vmatpush1.msra.mxu0 %v1514
    %1783 = vmatprep.subr.mxu0 0.0
    %1784 = vmatpush1.msra.mxu0 %v1515
    %1785 = vmatprep.subr.mxu0 0.0
    %1786 = vmatpush1.msra.mxu0 %v1516
    %1787 = vmatprep.subr.mxu0 0.0
    %1788 = vmatpush1.msra.mxu0 %v1517
    %1789 = vmatprep.subr.mxu0 0.0
    %1790 = vmatpush1.msra.mxu0 %v1518
    %1791 = vmatprep.subr.mxu0 0.0
    %1792 = vmatpush1.msra.mxu0 %v1519
    %1793 = vmatprep.subr.mxu0 0.0
    %1794 = vmatpush1.msra.mxu0 %v1520
    %1795 = vmatprep.mubr.f32.mxu0 %v1264
    %1796 = vmatmul.mubr.f32.gmra.mrb[0].mxu0 %v1263
    %v1797 = vpop.f32.mrb[0].mxu0
    %v1798 = vadd.f32 %v1728, %v1797
    %v1799 = vpop.f32.mrb[0].mxu0
    %1800 = vdwg.mxu0
    %1801 = vst [vmem:[#allocation7] sm:$0x3] %v1798
    // Predicated region
    $region30: #{i2s_forward.1} parent=1 // pred_check
      _
    $region31: #{i2s_forward.1} parent=1 // pred_check_branch
      %1803 = sbr.rel (0) target = $region33
    $region32: #{i2s_forward.1} parent=1 // pred_region
      %s1805 = ssub.s32 32, 32
      %1806 = vsyncadd [#allocation4], %s1805
      %s1808 = sshll.u32 [#allocation7], 4
      %s1809 = int_to_ptr.vmem [resolvable:$true] %s1808
      %1811 = dma.vmem_to_hbm [thread:$0]  %s1809, 32, %s5, [#allocation4]
    $region33: #{i2s_forward.1} parent=1 // pred_fallthru
      _
    // Predicated region
    $region34: #{i2s_forward.1} parent=1 // pred_check
      _
    $region35: #{i2s_forward.1} parent=1 // pred_check_branch
      %1813 = sbr.rel (0) target = $region37
    $region36: #{i2s_forward.1} parent=1 // pred_region
      %1814 = dma.done [#allocation4], 32
    $region37: #{i2s_forward.1} parent=1 // pred_fallthru
      _
    %1815 = vsyncpa [#allocation3], 1
    %1816 = vsyncpa [#allocation6], 1
    %1817 = vsyncpa [#allocation4], 1

</llo_original>
